<compile_context>
chip_gen: v5e
topology: v5e:2x2
jax: 0.10.0
libtpu: 0.0.40
codegen_flags: <defaults>
</compile_context>

<pallas_src>
import jax
import jax.numpy as jnp
from jax.experimental import pallas as pl
from jax.experimental.pallas import tpu as pltpu


def adapter_kernel(x_ref, w1_ref, b1_ref, w2_ref, b2_ref, o_ref):
    """One (tile_m, D) row tile: out = x + (relu(x@W1 + b1) @ W2 + b2)."""
    x = x_ref[...]                                        # (tm, D), I/O dtype
    # MXU matmuls with bf16 operands, f32 accumulation.
    h = jnp.dot(x.astype(w1_ref.dtype), w1_ref[...],
                preferred_element_type=jnp.float32)
    h = jnp.maximum(h + b1_ref[...].astype(jnp.float32), 0.0)   # bias + ReLU in f32
    y = jnp.dot(h.astype(w2_ref.dtype), w2_ref[...],
                preferred_element_type=jnp.float32)
    y = y + b2_ref[...].astype(jnp.float32)
    # Residual add in f32 against the untouched input tile.
    o_ref[...] = (x.astype(jnp.float32) + y).astype(o_ref.dtype)


def clip_adapter(x, w1, b1, w2, b2, *, tile_m=512,
                 compute_dtype=jnp.bfloat16, io_dtype=None):
    """Residual adapter: x + relu(x @ w1 + b1) @ w2 + b2.

    x: (..., input_dim); w1: (input_dim, adapter_dim); w2: (adapter_dim, input_dim)
    (i.e. the transposes of the PyTorch nn.Linear weights). Output matches x's
    shape and (by default) dtype.

    io_dtype: optional dtype for streamed activations (e.g. jnp.bfloat16).
      The kernel is HBM-bound, so bf16 I/O roughly halves traffic; the residual
      still accumulates in f32 in-kernel. When None, x's dtype is preserved.
    """
    orig_shape = x.shape
    D = orig_shape[-1]
    A = w1.shape[1]
    assert w1.shape == (D, A) and w2.shape == (A, D)
    assert D % 128 == 0 and A % 128 == 0, "feature dims must stay lane-aligned"

    if io_dtype is not None:
        x = x.astype(io_dtype)
    out_dtype = x.dtype

    # Flatten all leading dims (batch, CLIP tokens, ...) into the MXU M axis.
    # No padding: grid = cdiv(M, tm); Pallas masks the ragged last block's
    # stores, and the computation is row-independent so boundary-block garbage
    # rows never touch valid output rows.
    x2 = x.reshape(-1, D)
    M = x2.shape[0]

    # Tile sizing: multiple of 8 sublanes, clamped to [8, 1024] (raise the VMEM
    # limit below before going past 1024).
    rup = lambda a, b: -(-a // b) * b
    tm = max(8, min(rup(tile_m, 8), 1024))
    # Guarantee >= 2 grid steps whenever possible so the "parallel" M axis can
    # shard across the 2 TensorCores on v7x and split per-step overhead.
    if M > 8:
        tm = min(tm, rup(pl.cdiv(M, 2), 8))
    n_tiles = pl.cdiv(M, tm)

    # bf16 weights: grid-invariant and VMEM-resident across the whole grid.
    w1c = w1.astype(compute_dtype)
    w2c = w2.astype(compute_dtype)
    b1r = jnp.asarray(b1, jnp.float32).reshape(1, A)
    b2r = jnp.asarray(b2, jnp.float32).reshape(1, D)

    io_item = jnp.dtype(x2.dtype).itemsize
    out_item = jnp.dtype(out_dtype).itemsize
    w_item = jnp.dtype(compute_dtype).itemsize

    # Explicit VMEM budget: double-buffered x/out streams + weights + f32
    # intermediates, with 2x margin; capped at 32 MiB (safe on v5e/v6e/v7x).
    footprint = (2 * tm * D * io_item + 2 * tm * D * out_item
                 + 2 * (D * A + A * D) * w_item
                 + (A + D) * 4
                 + tm * A * 4 + 2 * tm * D * 4)
    vmem_limit = int(min(max(2 * footprint, 16 * 1024 * 1024), 32 * 1024 * 1024))

    flops = 4 * M * D * A  # two matmuls, 2*M*D*A each
    bytes_accessed = (M * D * (io_item + out_item)
                      + 2 * D * A * w_item + (A + D) * 4)

    out = pl.pallas_call(
        adapter_kernel,
        out_shape=jax.ShapeDtypeStruct((M, D), out_dtype),
        grid_spec=pltpu.PrefetchScalarGridSpec(
            num_scalar_prefetch=0,
            grid=(n_tiles,),
            in_specs=[
                # Streamed row tile: new block every step (double-buffered).
                pl.BlockSpec((tm, D), lambda i: (i, 0)),
                # Weights / biases: grid-invariant blocks (fetched once).
                pl.BlockSpec((D, A), lambda i: (0, 0)),
                pl.BlockSpec((1, A), lambda i: (0, 0)),
                pl.BlockSpec((A, D), lambda i: (0, 0)),
                pl.BlockSpec((1, D), lambda i: (0, 0)),
            ],
            # Output stays lane-dense (D multiple of 128) -> unmasked vst on
            # full tiles; only the ragged last block uses sublane masking.
            out_specs=pl.BlockSpec((tm, D), lambda i: (i, 0)),
        ),
        compiler_params=pltpu.CompilerParams(
            dimension_semantics=("parallel",),
            vmem_limit_bytes=vmem_limit),
        cost_estimate=pl.CostEstimate(flops=flops, transcendentals=0,
                                      bytes_accessed=bytes_accessed),
    )(x2, w1c, b1r, w2c, b2r)

    return out.reshape(orig_shape)


if __name__ == "__main__":
    input_dim = 512      # CLIPAdapter defaults
    adapter_dim = 256
    batch, seq = 2, 77   # CLIP-token-style input; M=154 exercises the ragged
                         # last block (masked stores) and the >=2-tile split.

    key = jax.random.PRNGKey(0)
    kx, k1, kb1, k2, kb2 = jax.random.split(key, 5)

    x = jax.random.normal(kx, (batch, seq, input_dim), dtype=jnp.float32)

    # Deterministic synthetic nn.Linear params (stored as (in, out) == torch W.T).
    bound1 = 1.0 / jnp.sqrt(input_dim)
    w1 = jax.random.uniform(k1, (input_dim, adapter_dim),
                            minval=-bound1, maxval=bound1, dtype=jnp.float32)
    b1 = jax.random.uniform(kb1, (adapter_dim,),
                            minval=-bound1, maxval=bound1, dtype=jnp.float32)
    bound2 = 1.0 / jnp.sqrt(adapter_dim)
    w2 = jax.random.uniform(k2, (adapter_dim, input_dim),
                            minval=-bound2, maxval=bound2, dtype=jnp.float32)
    b2 = jax.random.uniform(kb2, (input_dim,),
                            minval=-bound2, maxval=bound2, dtype=jnp.float32)

    out = clip_adapter(x, w1, b1, w2, b2)
    out = jax.block_until_ready(out)

    # Pure-JAX f32 reference; kernel feeds the MXU bf16, so tolerance is
    # loosened accordingly (use compute_dtype=jnp.float32 for exact parity).
    ref = x + (jnp.maximum(x @ w1 + b1, 0.0) @ w2 + b2)
    assert out.shape == x.shape and out.dtype == x.dtype
    assert jnp.allclose(out, ref, atol=3e-2, rtol=3e-2), "mismatch vs reference"

    print("KERNEL_OK")
</pallas_src>

<mosaic_0001>
module attributes {stable_mosaic.version = 11 : i64} {
  func.func @adapter_kernel(%arg0: i32, %arg1: memref<80x512xf32, #tpu.memory_space<vmem>>, %arg2: memref<512x256xbf16, #tpu.memory_space<vmem>>, %arg3: memref<1x256xf32, #tpu.memory_space<vmem>>, %arg4: memref<256x512xbf16, #tpu.memory_space<vmem>>, %arg5: memref<1x512xf32, #tpu.memory_space<vmem>>, %arg6: memref<80x512xf32, #tpu.memory_space<vmem>>) attributes {dimension_semantics = [#tpu.dimension_semantics<parallel>], iteration_bounds = array<i64: 2>, scalar_prefetch = 0 : i64, scratch_operands = 0 : i64, tpu.core_type = #tpu.core_type<tc>, window_params = [{transform_indices = @transform_0, window_bounds = array<i64: 80, 512>}, {pipeline_mode = #tpu.pipeline_mode<synchronous>, transform_indices = @transform_1, window_bounds = array<i64: 512, 256>}, {pipeline_mode = #tpu.pipeline_mode<synchronous>, transform_indices = @transform_2, window_bounds = array<i64: 1, 256>}, {pipeline_mode = #tpu.pipeline_mode<synchronous>, transform_indices = @transform_3, window_bounds = array<i64: 256, 512>}, {pipeline_mode = #tpu.pipeline_mode<synchronous>, transform_indices = @transform_4, window_bounds = array<i64: 1, 512>}, {transform_indices = @transform_5, window_bounds = array<i64: 80, 512>}]} {
    %c0 = arith.constant 0 : index
    %c0_0 = arith.constant 0 : index
    %0 = vector.load %arg1[%c0, %c0_0] : memref<80x512xf32, #tpu.memory_space<vmem>>, vector<80x512xf32>
    %1 = arith.truncf %0 : vector<80x512xf32> to vector<80x512xbf16>
    %c0_1 = arith.constant 0 : index
    %c0_2 = arith.constant 0 : index
    %2 = vector.load %arg2[%c0_1, %c0_2] : memref<512x256xbf16, #tpu.memory_space<vmem>>, vector<512x256xbf16>
    %cst = arith.constant dense<0.000000e+00> : vector<80x256xf32>
    %3 = tpu.matmul %1, %2, %cst {dimension_numbers = #tpu.dot_dimension_numbers<[1], [0], [0], [1], [0, 0, 1, 1], [], []>} : vector<80x512xbf16>, vector<512x256xbf16>, vector<80x256xf32> -> vector<80x256xf32>
    %c0_3 = arith.constant 0 : index
    %c0_4 = arith.constant 0 : index
    %4 = vector.load %arg3[%c0_3, %c0_4] : memref<1x256xf32, #tpu.memory_space<vmem>>, vector<1x256xf32>
    %5 = vector.broadcast %4 : vector<1x256xf32> to vector<80x256xf32>
    %6 = arith.addf %3, %5 : vector<80x256xf32>
    %cst_5 = arith.constant 0.000000e+00 : f32
    %7 = vector.broadcast %cst_5 : f32 to vector<80x256xf32>
    %8 = arith.maximumf %6, %7 : vector<80x256xf32>
    %9 = arith.truncf %8 : vector<80x256xf32> to vector<80x256xbf16>
    %c0_6 = arith.constant 0 : index
    %c0_7 = arith.constant 0 : index
    %10 = vector.load %arg4[%c0_6, %c0_7] : memref<256x512xbf16, #tpu.memory_space<vmem>>, vector<256x512xbf16>
    %cst_8 = arith.constant dense<0.000000e+00> : vector<80x512xf32>
    %11 = tpu.matmul %9, %10, %cst_8 {dimension_numbers = #tpu.dot_dimension_numbers<[1], [0], [0], [1], [0, 0, 1, 1], [], []>} : vector<80x256xbf16>, vector<256x512xbf16>, vector<80x512xf32> -> vector<80x512xf32>
    %c0_9 = arith.constant 0 : index
    %c0_10 = arith.constant 0 : index
    %12 = vector.load %arg5[%c0_9, %c0_10] : memref<1x512xf32, #tpu.memory_space<vmem>>, vector<1x512xf32>
    %13 = vector.broadcast %12 : vector<1x512xf32> to vector<80x512xf32>
    %14 = arith.addf %11, %13 : vector<80x512xf32>
    %15 = arith.addf %0, %14 : vector<80x512xf32>
    %c0_11 = arith.constant 0 : index
    %c0_12 = arith.constant 0 : index
    %16 = vector.load %arg6[%c0_11, %c0_12] : memref<80x512xf32, #tpu.memory_space<vmem>>, vector<80x512xf32>
    tpu.vector_store %arg6[%c0_11, %c0_12], %15 {strides = array<i32>} : memref<80x512xf32, #tpu.memory_space<vmem>>, vector<80x512xf32>,
    return
  }
  func.func @transform_0(%arg0: i32) -> (i32, i32) {
    %c0_i32 = arith.constant 0 : i32
    %c0_i32_0 = arith.constant 0 : i32
    return %arg0, %c0_i32 : i32, i32
  }
  func.func @transform_1(%arg0: i32) -> (i32, i32) {
    %c0_i32 = arith.constant 0 : i32
    %c0_i32_0 = arith.constant 0 : i32
    %c0_i32_1 = arith.constant 0 : i32
    return %c0_i32, %c0_i32_0 : i32, i32
  }
  func.func @transform_2(%arg0: i32) -> (i32, i32) {
    %c0_i32 = arith.constant 0 : i32
    %c0_i32_0 = arith.constant 0 : i32
    %c0_i32_1 = arith.constant 0 : i32
    return %c0_i32, %c0_i32_0 : i32, i32
  }
  func.func @transform_3(%arg0: i32) -> (i32, i32) {
    %c0_i32 = arith.constant 0 : i32
    %c0_i32_0 = arith.constant 0 : i32
    %c0_i32_1 = arith.constant 0 : i32
    return %c0_i32, %c0_i32_0 : i32, i32
  }
  func.func @transform_4(%arg0: i32) -> (i32, i32) {
    %c0_i32 = arith.constant 0 : i32
    %c0_i32_0 = arith.constant 0 : i32
    %c0_i32_1 = arith.constant 0 : i32
    return %c0_i32, %c0_i32_0 : i32, i32
  }
  func.func @transform_5(%arg0: i32) -> (i32, i32) {
    %c0_i32 = arith.constant 0 : i32
    %c0_i32_0 = arith.constant 0 : i32
    return %arg0, %c0_i32 : i32, i32
  }
}

</mosaic_0001>

<llo_original>
// kernel: tpu_custom_call.1
$region0: #{tpu_custom_call.1}
  #allocation0 [shape = 'u32[]', space=smem, size = 0x4, offset = 0x4, fixed_abs, tag = 'smem constant byte address 0x4 - core index']
  #allocation1 [shape = 'u32[72,128]{1,0:T(1,128)}', space=vmem, size = 0x9000, scoped, tag = 'internal scratch']
  %s0 = inlined_call_operand.hbm [shape: f32[154,512], index: 0, kind: input, shape index: {}]
  %s1 = inlined_call_operand.hbm [shape: bf16[512,256], index: 1, kind: input, shape index: {}]
  %s2 = inlined_call_operand.hbm [shape: f32[1,256], index: 2, kind: input, shape index: {}]
  %s3 = inlined_call_operand.hbm [shape: bf16[256,512], index: 3, kind: input, shape index: {}]
  %s4 = inlined_call_operand.hbm [shape: f32[1,512], index: 4, kind: input, shape index: {}]
  %s5 = inlined_call_operand.hbm [shape: f32[154,512], index: 5, kind: output, shape index: {}]
  %s6 = sld [smem:[#allocation0]]
  $region73: #{tpu_custom_call.1} parent=0
    _
  %s8 = ssub.s32 1, %s6
  %s9 = scalar_select 0, %s8, %s6
  $region1: #{tpu_custom_call.1} parent=0
    #allocation2 [shape = 'u8[327680]{0}', space=vmem, size = 0x50000, scoped, tag = 'input window, operand 0']
    #allocation3 [shape = 's32[2]{0}', space=sflag, size = 0x8, scoped, tag = 'scoped memory for tpu_custom_call.1']
    #allocation4 [shape = 's32[2]{0}', space=sflag, size = 0x8, scoped, tag = 'scoped memory for tpu_custom_call.1']
    #allocation5 [shape = 'u8[262144]{0}', space=vmem, size = 0x40000, scoped, tag = 'input window, operand 1, single buffered']
    #allocation6 [shape = 's32[1]{0}', space=sflag, size = 0x4, scoped, tag = 'scoped memory for tpu_custom_call.1']
    #allocation7 [shape = 'u8[1024]{0}', space=vmem, size = 0x400, scoped, tag = 'input window, operand 2, single buffered']
    #allocation8 [shape = 'u8[262144]{0}', space=vmem, size = 0x40000, scoped, tag = 'input window, operand 3, single buffered']
    #allocation9 [shape = 's32[1]{0}', space=sflag, size = 0x4, scoped, tag = 'scoped memory for tpu_custom_call.1']
    #allocation10 [shape = 'u8[2048]{0}', space=vmem, size = 0x800, scoped, tag = 'input window, operand 4, single buffered']
    #allocation11 [shape = 'u8[327680]{0}', space=vmem, size = 0x50000, scoped, tag = 'output window, operand 0']
    %10 = vsyncpa [#allocation3], 0
    %s11 = scalar_lea.sflag [#allocation3], 1
    %12 = vsyncpa %s11, 0
    %13 = vsyncpa [#allocation6], 0
    %14 = vsyncpa [#allocation9], 0
    %15 = vsyncpa [#allocation4], 0
    %s16 = scalar_lea.sflag [#allocation4], 1
    %17 = vsyncpa %s16, 0
    loop: start=0, step=1, limit=4
    $region2: #{tpu_custom_call.1} parent=1 // loop_pre_header
      _
    $region3: #{tpu_custom_call.1} parent=1 // loop_header
      %s19 = sphi 0, %s23
      %p20 = scmp.ge.s32.totalorder %s19, 4
      %s29 = sphi 0, %s31
      %s32 = sphi 0, %s29
      %s33 = sphi 0, %s32
      %s49 = sphi 0, %s33
      %s53 = sphi 0, %s53
      %s55 = sphi 0, %s53
      %s56 = sphi 0, %s55
      %s70 = sphi 0, %s56
      %s74 = sphi 0, %s74
      %s76 = sphi 0, %s74
      %s77 = sphi 0, %s76
      %s91 = sphi 0, %s77
      %s95 = sphi 0, %s95
      %s97 = sphi 0, %s95
      %s98 = sphi 0, %s97
      %s112 = sphi 0, %s98
      %s116 = sphi 0, %s116
      %s118 = sphi 0, %s116
      %s119 = sphi 0, %s118
      %s133 = sphi 0, %s119
      %s139 = sphi 0, %s141
      %s142 = sphi 0, %s139
      %s143 = sphi 0, %s142
      %s159 = sphi 0, %s143
    $region4: #{tpu_custom_call.1} parent=1 // loop_header_branch
      %22 = sbr.rel (%p20) target = $region8
    $region5: #{tpu_custom_call.1} parent=1 // loop_body
      %s24 = ssub.s32 %s19, 1
      %s25 = ssub.s32 %s19, 2
      %s26 = sadd.s32 %s19, 1
      %s27 = ssub.s32 %s19, %s26
      %p28 = scmp.eq.s32.totalorder %s27, 0
      %s30 = sadd.s32 %s29, 1
      %s31 = scalar_select %p28, %s29, %s30
      %p34 = pneg %p28
      %p35 = scmp.eq.s32.totalorder %s19, 1
      %p36 = por %p34, %p35
      %p37 = scmp.ne.s32.totalorder %s29, %s32
      %p38 = scmp.eq.s32.totalorder %s19, 0
      %p39 = por %p37, %p38
      %p40 = scmp.ne.s32.totalorder %s29, %s32
      %p41 = scmp.eq.s32.totalorder %s24, 1
      %p42 = por %p40, %p41
      %p43 = scmp.ne.s32.totalorder %s32, %s33
      %p44 = scmp.eq.s32.totalorder %s24, 0
      %p45 = por %p43, %p44
      %p46 = scmp.ne.s32.totalorder %s32, %s33
      %p47 = scmp.eq.s32.totalorder %s25, 1
      %p48 = por %p46, %p47
      %p50 = scmp.ne.s32.totalorder %s33, %s49
      %p51 = scmp.eq.s32.totalorder %s25, 0
      %p52 = por %p50, %p51
      %s54 = sadd.s32 %s53, 1
      %p57 = scmp.eq.s32.totalorder %s19, 1
      %p58 = scmp.ne.s32.totalorder %s53, %s55
      %p59 = scmp.eq.s32.totalorder %s19, 0
      %p60 = por %p58, %p59
      %p61 = scmp.ne.s32.totalorder %s53, %s55
      %p62 = scmp.eq.s32.totalorder %s24, 1
      %p63 = por %p61, %p62
      %p64 = scmp.ne.s32.totalorder %s55, %s56
      %p65 = scmp.eq.s32.totalorder %s24, 0
      %p66 = por %p64, %p65
      %p67 = scmp.ne.s32.totalorder %s55, %s56
      %p68 = scmp.eq.s32.totalorder %s25, 1
      %p69 = por %p67, %p68
      %p71 = scmp.ne.s32.totalorder %s56, %s70
      %p72 = scmp.eq.s32.totalorder %s25, 0
      %p73 = por %p71, %p72
      %s75 = sadd.s32 %s74, 1
      %p78 = scmp.eq.s32.totalorder %s19, 1
      %p79 = scmp.ne.s32.totalorder %s74, %s76
      %p80 = scmp.eq.s32.totalorder %s19, 0
      %p81 = por %p79, %p80
      %p82 = scmp.ne.s32.totalorder %s74, %s76
      %p83 = scmp.eq.s32.totalorder %s24, 1
      %p84 = por %p82, %p83
      %p85 = scmp.ne.s32.totalorder %s76, %s77
      %p86 = scmp.eq.s32.totalorder %s24, 0
      %p87 = por %p85, %p86
      %p88 = scmp.ne.s32.totalorder %s76, %s77
      %p89 = scmp.eq.s32.totalorder %s25, 1
      %p90 = por %p88, %p89
      %p92 = scmp.ne.s32.totalorder %s77, %s91
      %p93 = scmp.eq.s32.totalorder %s25, 0
      %p94 = por %p92, %p93
      %s96 = sadd.s32 %s95, 1
      %p99 = scmp.eq.s32.totalorder %s19, 1
      %p100 = scmp.ne.s32.totalorder %s95, %s97
      %p101 = scmp.eq.s32.totalorder %s19, 0
      %p102 = por %p100, %p101
      %p103 = scmp.ne.s32.totalorder %s95, %s97
      %p104 = scmp.eq.s32.totalorder %s24, 1
      %p105 = por %p103, %p104
      %p106 = scmp.ne.s32.totalorder %s97, %s98
      %p107 = scmp.eq.s32.totalorder %s24, 0
      %p108 = por %p106, %p107
      %p109 = scmp.ne.s32.totalorder %s97, %s98
      %p110 = scmp.eq.s32.totalorder %s25, 1
      %p111 = por %p109, %p110
      %p113 = scmp.ne.s32.totalorder %s98, %s112
      %p114 = scmp.eq.s32.totalorder %s25, 0
      %p115 = por %p113, %p114
      %s117 = sadd.s32 %s116, 1
      %p120 = scmp.eq.s32.totalorder %s19, 1
      %p121 = scmp.ne.s32.totalorder %s116, %s118
      %p122 = scmp.eq.s32.totalorder %s19, 0
      %p123 = por %p121, %p122
      %p124 = scmp.ne.s32.totalorder %s116, %s118
      %p125 = scmp.eq.s32.totalorder %s24, 1
      %p126 = por %p124, %p125
      %p127 = scmp.ne.s32.totalorder %s118, %s119
      %p128 = scmp.eq.s32.totalorder %s24, 0
      %p129 = por %p127, %p128
      %p130 = scmp.ne.s32.totalorder %s118, %s119
      %p131 = scmp.eq.s32.totalorder %s25, 1
      %p132 = por %p130, %p131
      %p134 = scmp.ne.s32.totalorder %s119, %s133
      %p135 = scmp.eq.s32.totalorder %s25, 0
      %p136 = por %p134, %p135
      %s137 = ssub.s32 %s19, %s26
      %p138 = scmp.eq.s32.totalorder %s137, 0
      %s140 = sadd.s32 %s139, 1
      %s141 = scalar_select %p138, %s139, %s140
      %p144 = pneg %p138
      %p145 = scmp.eq.s32.totalorder %s19, 1
      %p146 = por %p144, %p145
      %p147 = scmp.ne.s32.totalorder %s139, %s142
      %p148 = scmp.eq.s32.totalorder %s19, 0
      %p149 = por %p147, %p148
      %p150 = scmp.ne.s32.totalorder %s139, %s142
      %p151 = scmp.eq.s32.totalorder %s24, 1
      %p152 = por %p150, %p151
      %p153 = scmp.ne.s32.totalorder %s142, %s143
      %p154 = scmp.eq.s32.totalorder %s24, 0
      %p155 = por %p153, %p154
      %p156 = scmp.ne.s32.totalorder %s142, %s143
      %p157 = scmp.eq.s32.totalorder %s25, 1
      %p158 = por %p156, %p157
      %p160 = scmp.ne.s32.totalorder %s143, %s159
      %p161 = scmp.eq.s32.totalorder %s25, 0
      %p162 = por %p160, %p161
      %p163 = scmp.le.s32.totalorder 1, %s19
      %p164 = scmp.lt.s32.totalorder %s19, 3
      %p165 = pnand %p163, %p164
      %p166 = pneg %p165
      // Predicated region
      $region9: #{tpu_custom_call.1} parent=5 // pred_check
        _
      $region10: #{tpu_custom_call.1} parent=5 // pred_check_branch
        %168 = sbr.rel (%p165) target = $region12
      $region11: #{tpu_custom_call.1} parent=5 // pred_region
        %s169 = ssub.s32 %s19, 1
        // Predicated region
        $region13: #{tpu_custom_call.1} parent=11 // pred_check
          %p170 = pneg %p66
        $region14: #{tpu_custom_call.1} parent=11 // pred_check_branch
          %172 = sbr.rel (%p170) target = $region16
        $region15: #{tpu_custom_call.1} parent=11 // pred_region
          %174 = vsyncadd [#allocation6], 0
          %s175 = sshll.u32 %s1, 4
          %s176 = int_to_ptr.hbm [resolvable:$true] %s175
          %s177 = sshll.u32 [#allocation5], 4
          %s178 = int_to_ptr.vmem [resolvable:$true] %s177
          %183 = dma.hbm_to_vmem [thread:$0]  %s176, 8192, %s178, [#allocation6], 128, 128, 8
        $region16: #{tpu_custom_call.1} parent=11 // pred_fallthru
          _
        // Predicated region
        $region17: #{tpu_custom_call.1} parent=11 // pred_check
          %p184 = pneg %p87
        $region18: #{tpu_custom_call.1} parent=11 // pred_check_branch
          %186 = sbr.rel (%p184) target = $region20
        $region19: #{tpu_custom_call.1} parent=11 // pred_region
          %188 = vsyncadd [#allocation6], 0
          %s190 = sshll.u32 %s2, 4
          %s191 = int_to_ptr.hbm [resolvable:$true] %s190
          %s192 = sshll.u32 [#allocation7], 4
          %s193 = int_to_ptr.vmem [resolvable:$true] %s192
          %195 = dma.hbm_to_vmem [thread:$0]  %s191, 32, %s193, [#allocation6]
        $region20: #{tpu_custom_call.1} parent=11 // pred_fallthru
          _
        // Predicated region
        $region21: #{tpu_custom_call.1} parent=11 // pred_check
          %p196 = pneg %p108
        $region22: #{tpu_custom_call.1} parent=11 // pred_check_branch
          %198 = sbr.rel (%p196) target = $region24
        $region23: #{tpu_custom_call.1} parent=11 // pred_region
          %200 = vsyncadd [#allocation9], 0
          %s201 = sshll.u32 %s3, 4
          %s202 = int_to_ptr.hbm [resolvable:$true] %s201
          %s203 = sshll.u32 [#allocation8], 4
          %s204 = int_to_ptr.vmem [resolvable:$true] %s203
          %209 = dma.hbm_to_vmem [thread:$0]  %s202, 8192, %s204, [#allocation9], 256, 256, 16
        $region24: #{tpu_custom_call.1} parent=11 // pred_fallthru
          _
        // Predicated region
        $region25: #{tpu_custom_call.1} parent=11 // pred_check
          %p210 = pneg %p129
        $region26: #{tpu_custom_call.1} parent=11 // pred_check_branch
          %212 = sbr.rel (%p210) target = $region28
        $region27: #{tpu_custom_call.1} parent=11 // pred_region
          %214 = vsyncadd [#allocation9], 0
          %s216 = sshll.u32 %s4, 4
          %s217 = int_to_ptr.hbm [resolvable:$true] %s216
          %s218 = sshll.u32 [#allocation10], 4
          %s219 = int_to_ptr.vmem [resolvable:$true] %s218
          %221 = dma.hbm_to_vmem [thread:$0]  %s217, 64, %s219, [#allocation9]
        $region28: #{tpu_custom_call.1} parent=11 // pred_fallthru
          _
      $region12: #{tpu_custom_call.1} parent=5 // pred_fallthru
        _
      %p222 = scmp.lt.s32.totalorder %s19, 2
      // Predicated region
      $region29: #{tpu_custom_call.1} parent=5 // pred_check
        %p223 = pneg %p222
      $region30: #{tpu_custom_call.1} parent=5 // pred_check_branch
        %225 = sbr.rel (%p223) target = $region32
      $region31: #{tpu_custom_call.1} parent=5 // pred_region
        // Predicated region
        $region33: #{tpu_custom_call.1} parent=31 // pred_check
          %p226 = pneg %p39
        $region34: #{tpu_custom_call.1} parent=31 // pred_check_branch
          %228 = sbr.rel (%p226) target = $region36
        $region35: #{tpu_custom_call.1} parent=31 // pred_region
          %s229 = sand.u32 %s29, 1
          %s230 = scalar_lea.sflag [#allocation3], %s229
          %s231 = sand.u32 %s29, 1
          %s232 = smul.addr %s231, 320
          %s233 = scalar_lea.vmem [#allocation2], %s232
          %s234 = smul.u32 10, %s19
          %236 = vsyncadd %s230, 0
          %s237 = smul.addr %s234, 4
          %s238 = smul.addr %s237, 8
          %s239 = scalar_lea.hbm %s0, %s238
          %s240 = sshll.u32 %s239, 4
          %s241 = int_to_ptr.hbm [resolvable:$true] %s240
          %s242 = sshll.u32 %s233, 4
          %s243 = int_to_ptr.vmem [resolvable:$true] %s242
          %248 = dma.hbm_to_vmem [thread:$0]  %s241, 5120, %s243, %s230, 512, 512, 32
        $region36: #{tpu_custom_call.1} parent=31 // pred_fallthru
          _
      $region32: #{tpu_custom_call.1} parent=5 // pred_fallthru
        _
      %p249 = scmp.le.s32.totalorder 1, %s19
      %p250 = scmp.lt.s32.totalorder %s19, 3
      %p251 = pnand %p249, %p250
      %p252 = pneg %p251
      // Predicated region
      $region37: #{tpu_custom_call.1} parent=5 // pred_check
        _
      $region38: #{tpu_custom_call.1} parent=5 // pred_check_branch
        %254 = sbr.rel (%p251) target = $region40
      $region39: #{tpu_custom_call.1} parent=5 // pred_region
        %s255 = ssub.s32 %s19, 1
        %s256 = sand.u32 %s32, 1
        %s257 = scalar_lea.sflag [#allocation3], %s256
        %s258 = sand.u32 %s32, 1
        %s259 = smul.addr %s258, 320
        %s260 = scalar_lea.vmem [#allocation2], %s259
        // Predicated region
        $region41: #{tpu_custom_call.1} parent=39 // pred_check
          %p261 = pneg %p45
        $region42: #{tpu_custom_call.1} parent=39 // pred_check_branch
          %263 = sbr.rel (%p261) target = $region44
        $region43: #{tpu_custom_call.1} parent=39 // pred_region
          %265 = dma.done %s257, 5120
        $region44: #{tpu_custom_call.1} parent=39 // pred_fallthru
          _
        // Predicated region
        $region45: #{tpu_custom_call.1} parent=39 // pred_check
          %p266 = pneg %p66
        $region46: #{tpu_custom_call.1} parent=39 // pred_check_branch
          %268 = sbr.rel (%p266) target = $region48
        $region47: #{tpu_custom_call.1} parent=39 // pred_region
          %270 = dma.done [#allocation6], 8192
        $region48: #{tpu_custom_call.1} parent=39 // pred_fallthru
          _
        // Predicated region
        $region49: #{tpu_custom_call.1} parent=39 // pred_check
          %p271 = pneg %p87
        $region50: #{tpu_custom_call.1} parent=39 // pred_check_branch
          %273 = sbr.rel (%p271) target = $region52
        $region51: #{tpu_custom_call.1} parent=39 // pred_region
          %275 = dma.done [#allocation6], 32
        $region52: #{tpu_custom_call.1} parent=39 // pred_fallthru
          _
        // Predicated region
        $region53: #{tpu_custom_call.1} parent=39 // pred_check
          %p276 = pneg %p108
        $region54: #{tpu_custom_call.1} parent=39 // pred_check_branch
          %278 = sbr.rel (%p276) target = $region56
        $region55: #{tpu_custom_call.1} parent=39 // pred_region
          %280 = dma.done [#allocation9], 8192
        $region56: #{tpu_custom_call.1} parent=39 // pred_fallthru
          _
        // Predicated region
        $region57: #{tpu_custom_call.1} parent=39 // pred_check
          %p281 = pneg %p129
        $region58: #{tpu_custom_call.1} parent=39 // pred_check_branch
          %283 = sbr.rel (%p281) target = $region60
        $region59: #{tpu_custom_call.1} parent=39 // pred_region
          %285 = dma.done [#allocation9], 64
        $region60: #{tpu_custom_call.1} parent=39 // pred_fallthru
          _
        %s286 = sand.u32 %s32, 1
        %s287 = scalar_lea.sflag [#allocation3], %s286
        %s288 = sand.u32 %s32, 1
        %s289 = smul.addr %s288, 320
        %s290 = scalar_lea.vmem [#allocation2], %s289
        %p291 = pneg %p45
        %p292 = pneg %p42
        %p293 = pneg %p66
        %p294 = pneg %p63
        %p295 = pneg %p87
        %p296 = pneg %p84
        %p297 = pneg %p108
        %p298 = pneg %p105
        %p299 = pneg %p129
        %p300 = pneg %p126
        %p301 = pneg %p155
        %p302 = pneg %p152
        %s303 = sand.u32 %s142, 1
        %s304 = scalar_lea.sflag [#allocation4], %s303
        %s305 = sand.u32 %s142, 1
        %s306 = smul.addr %s305, 320
        %s307 = scalar_lea.vmem [#allocation11], %s306
        %s308 = smul.u32 10, %s24
        %s309 = smul.u32 10, %s24
        %v310 = vld [vmem:[%s260] sm:$0xff]
        %v311 = vld [vmem:[%s260 + $0x8] sm:$0xff]
        %v312 = vld [vmem:[%s260 + $0x10] sm:$0xff]
        %v313 = vld [vmem:[%s260 + $0x18] sm:$0xff]
        %v314 = vld [vmem:[%s260 + $0x20] sm:$0xff]
        %v315 = vld [vmem:[%s260 + $0x28] sm:$0xff]
        %v316 = vld [vmem:[%s260 + $0x30] sm:$0xff]
        %v317 = vld [vmem:[%s260 + $0x38] sm:$0xff]
        %v318 = vld [vmem:[%s260 + $0x40] sm:$0xff]
        %v319 = vld [vmem:[%s260 + $0x48] sm:$0xff]
        %v320 = vld [vmem:[%s260 + $0x50] sm:$0xff]
        %v321 = vld [vmem:[%s260 + $0x58] sm:$0xff]
        %v322 = vld [vmem:[%s260 + $0x60] sm:$0xff]
        %v323 = vld [vmem:[%s260 + $0x68] sm:$0xff]
        %v324 = vld [vmem:[%s260 + $0x70] sm:$0xff]
        %v325 = vld [vmem:[%s260 + $0x78] sm:$0xff]
        %v326 = vld [vmem:[%s260 + $0x80] sm:$0xff]
        %v327 = vld [vmem:[%s260 + $0x88] sm:$0xff]
        %v328 = vld [vmem:[%s260 + $0x90] sm:$0xff]
        %v329 = vld [vmem:[%s260 + $0x98] sm:$0xff]
        %v330 = vld [vmem:[%s260 + $0xa0] sm:$0xff]
        %v331 = vld [vmem:[%s260 + $0xa8] sm:$0xff]
        %v332 = vld [vmem:[%s260 + $0xb0] sm:$0xff]
        %v333 = vld [vmem:[%s260 + $0xb8] sm:$0xff]
        %v334 = vld [vmem:[%s260 + $0xc0] sm:$0xff]
        %v335 = vld [vmem:[%s260 + $0xc8] sm:$0xff]
        %v336 = vld [vmem:[%s260 + $0xd0] sm:$0xff]
        %v337 = vld [vmem:[%s260 + $0xd8] sm:$0xff]
        %v338 = vld [vmem:[%s260 + $0xe0] sm:$0xff]
        %v339 = vld [vmem:[%s260 + $0xe8] sm:$0xff]
        %v340 = vld [vmem:[%s260 + $0xf0] sm:$0xff]
        %v341 = vld [vmem:[%s260 + $0xf8] sm:$0xff]
        %v342 = vld [vmem:[%s260 + $0x100] sm:$0xff]
        %v343 = vld [vmem:[%s260 + $0x108] sm:$0xff]
        %v344 = vld [vmem:[%s260 + $0x110] sm:$0xff]
        %v345 = vld [vmem:[%s260 + $0x118] sm:$0xff]
        %v346 = vld [vmem:[%s260 + $0x120] sm:$0xff]
        %v347 = vld [vmem:[%s260 + $0x128] sm:$0xff]
        %v348 = vld [vmem:[%s260 + $0x130] sm:$0xff]
        %v349 = vld [vmem:[%s260 + $0x138] sm:$0xff]
        %v350 = vpack.c.bf16 %v314, %v310
        %v351 = vpack.c.bf16 %v315, %v311
        %v352 = vpack.c.bf16 %v316, %v312
        %v353 = vpack.c.bf16 %v317, %v313
        %v354 = vpack.c.bf16 %v322, %v318
        %v355 = vpack.c.bf16 %v323, %v319
        %v356 = vpack.c.bf16 %v324, %v320
        %v357 = vpack.c.bf16 %v325, %v321
        %v358 = vpack.c.bf16 %v330, %v326
        %v359 = vpack.c.bf16 %v331, %v327
        %v360 = vpack.c.bf16 %v332, %v328
        %v361 = vpack.c.bf16 %v333, %v329
        %v362 = vpack.c.bf16 %v338, %v334
        %v363 = vpack.c.bf16 %v339, %v335
        %v364 = vpack.c.bf16 %v340, %v336
        %v365 = vpack.c.bf16 %v341, %v337
        %v366 = vpack.c.bf16 %v346, %v342
        %v367 = vpack.c.bf16 %v347, %v343
        %v368 = vpack.c.bf16 %v348, %v344
        %v369 = vpack.c.bf16 %v349, %v345
        %v370 = vld [vmem:[#allocation5] sm:$0xff]
        %v371 = vld [vmem:[#allocation5 + $0x8] sm:$0xff]
        %v372 = vld [vmem:[#allocation5 + $0x10] sm:$0xff]
        %v373 = vld [vmem:[#allocation5 + $0x18] sm:$0xff]
        %v374 = vld [vmem:[#allocation5 + $0x20] sm:$0xff]
        %v375 = vld [vmem:[#allocation5 + $0x28] sm:$0xff]
        %v376 = vld [vmem:[#allocation5 + $0x30] sm:$0xff]
        %v377 = vld [vmem:[#allocation5 + $0x38] sm:$0xff]
        %v378 = vld [vmem:[#allocation5 + $0x40] sm:$0xff]
        %v379 = vld [vmem:[#allocation5 + $0x48] sm:$0xff]
        %v380 = vld [vmem:[#allocation5 + $0x50] sm:$0xff]
        %v381 = vld [vmem:[#allocation5 + $0x58] sm:$0xff]
        %v382 = vld [vmem:[#allocation5 + $0x60] sm:$0xff]
        %v383 = vld [vmem:[#allocation5 + $0x68] sm:$0xff]
        %v384 = vld [vmem:[#allocation5 + $0x70] sm:$0xff]
        %v385 = vld [vmem:[#allocation5 + $0x78] sm:$0xff]
        %v386 = vld [vmem:[#allocation5 + $0x80] sm:$0xff]
        %v387 = vld [vmem:[#allocation5 + $0x88] sm:$0xff]
        %v388 = vld [vmem:[#allocation5 + $0x90] sm:$0xff]
        %v389 = vld [vmem:[#allocation5 + $0x98] sm:$0xff]
        %v390 = vld [vmem:[#allocation5 + $0xa0] sm:$0xff]
        %v391 = vld [vmem:[#allocation5 + $0xa8] sm:$0xff]
        %v392 = vld [vmem:[#allocation5 + $0xb0] sm:$0xff]
        %v393 = vld [vmem:[#allocation5 + $0xb8] sm:$0xff]
        %v394 = vld [vmem:[#allocation5 + $0xc0] sm:$0xff]
        %v395 = vld [vmem:[#allocation5 + $0xc8] sm:$0xff]
        %v396 = vld [vmem:[#allocation5 + $0xd0] sm:$0xff]
        %v397 = vld [vmem:[#allocation5 + $0xd8] sm:$0xff]
        %v398 = vld [vmem:[#allocation5 + $0xe0] sm:$0xff]
        %v399 = vld [vmem:[#allocation5 + $0xe8] sm:$0xff]
        %v400 = vld [vmem:[#allocation5 + $0xf0] sm:$0xff]
        %v401 = vld [vmem:[#allocation5 + $0xf8] sm:$0xff]
        %v402 = vld [vmem:[#allocation5 + $0x100] sm:$0xff]
        %v403 = vld [vmem:[#allocation5 + $0x108] sm:$0xff]
        %v404 = vld [vmem:[#allocation5 + $0x110] sm:$0xff]
        %v405 = vld [vmem:[#allocation5 + $0x118] sm:$0xff]
        %v406 = vld [vmem:[#allocation5 + $0x120] sm:$0xff]
        %v407 = vld [vmem:[#allocation5 + $0x128] sm:$0xff]
        %v408 = vld [vmem:[#allocation5 + $0x130] sm:$0xff]
        %v409 = vld [vmem:[#allocation5 + $0x138] sm:$0xff]
        %v410 = vld [vmem:[#allocation5 + $0x140] sm:$0xff]
        %v411 = vld [vmem:[#allocation5 + $0x148] sm:$0xff]
        %v412 = vld [vmem:[#allocation5 + $0x150] sm:$0xff]
        %v413 = vld [vmem:[#allocation5 + $0x158] sm:$0xff]
        %v414 = vld [vmem:[#allocation5 + $0x160] sm:$0xff]
        %v415 = vld [vmem:[#allocation5 + $0x168] sm:$0xff]
        %v416 = vld [vmem:[#allocation5 + $0x170] sm:$0xff]
        %v417 = vld [vmem:[#allocation5 + $0x178] sm:$0xff]
        %v418 = vld [vmem:[#allocation5 + $0x180] sm:$0xff]
        %v419 = vld [vmem:[#allocation5 + $0x188] sm:$0xff]
        %v420 = vld [vmem:[#allocation5 + $0x190] sm:$0xff]
        %v421 = vld [vmem:[#allocation5 + $0x198] sm:$0xff]
        %v422 = vld [vmem:[#allocation5 + $0x1a0] sm:$0xff]
        %v423 = vld [vmem:[#allocation5 + $0x1a8] sm:$0xff]
        %v424 = vld [vmem:[#allocation5 + $0x1b0] sm:$0xff]
        %v425 = vld [vmem:[#allocation5 + $0x1b8] sm:$0xff]
        %v426 = vld [vmem:[#allocation5 + $0x1c0] sm:$0xff]
        %v427 = vld [vmem:[#allocation5 + $0x1c8] sm:$0xff]
        %v428 = vld [vmem:[#allocation5 + $0x1d0] sm:$0xff]
        %v429 = vld [vmem:[#allocation5 + $0x1d8] sm:$0xff]
        %v430 = vld [vmem:[#allocation5 + $0x1e0] sm:$0xff]
        %v431 = vld [vmem:[#allocation5 + $0x1e8] sm:$0xff]
        %v432 = vld [vmem:[#allocation5 + $0x1f0] sm:$0xff]
        %v433 = vld [vmem:[#allocation5 + $0x1f8] sm:$0xff]
        %v434 = vld [vmem:[#allocation7] sm:$0x3]
        %v436 = vperm.slane %v434, 0
        %v437 = vperm.slane %v434, 1
        %v504 = vunpack.c.l.b16 %v370
        %v505 = vunpack.c.h.b16 %v370
        %v506 = vunpack.c.l.b16 %v371
        %v507 = vunpack.c.h.b16 %v371
        %v508 = vunpack.c.l.b16 %v372
        %v509 = vunpack.c.h.b16 %v372
        %v510 = vunpack.c.l.b16 %v373
        %v511 = vunpack.c.h.b16 %v373
        %v512 = vunpack.c.l.b16 %v374
        %v513 = vunpack.c.h.b16 %v374
        %v514 = vunpack.c.l.b16 %v375
        %v515 = vunpack.c.h.b16 %v375
        %v516 = vunpack.c.l.b16 %v376
        %v517 = vunpack.c.h.b16 %v376
        %v518 = vunpack.c.l.b16 %v377
        %v519 = vunpack.c.h.b16 %v377
        %v520 = vunpack.c.l.b16 %v378
        %v521 = vunpack.c.h.b16 %v378
        %v522 = vunpack.c.l.b16 %v379
        %v523 = vunpack.c.h.b16 %v379
        %v524 = vunpack.c.l.b16 %v380
        %v525 = vunpack.c.h.b16 %v380
        %v526 = vunpack.c.l.b16 %v381
        %v527 = vunpack.c.h.b16 %v381
        %v528 = vunpack.c.l.b16 %v382
        %v529 = vunpack.c.h.b16 %v382
        %v530 = vunpack.c.l.b16 %v383
        %v531 = vunpack.c.h.b16 %v383
        %v532 = vunpack.c.l.b16 %v384
        %v533 = vunpack.c.h.b16 %v384
        %v534 = vunpack.c.l.b16 %v385
        %v535 = vunpack.c.h.b16 %v385
        %v536 = vunpack.c.l.b16 %v386
        %v537 = vunpack.c.h.b16 %v386
        %v538 = vunpack.c.l.b16 %v387
        %v539 = vunpack.c.h.b16 %v387
        %v540 = vunpack.c.l.b16 %v388
        %v541 = vunpack.c.h.b16 %v388
        %v542 = vunpack.c.l.b16 %v389
        %v543 = vunpack.c.h.b16 %v389
        %v544 = vunpack.c.l.b16 %v390
        %v545 = vunpack.c.h.b16 %v390
        %v546 = vunpack.c.l.b16 %v391
        %v547 = vunpack.c.h.b16 %v391
        %v548 = vunpack.c.l.b16 %v392
        %v549 = vunpack.c.h.b16 %v392
        %v550 = vunpack.c.l.b16 %v393
        %v551 = vunpack.c.h.b16 %v393
        %v552 = vunpack.c.l.b16 %v394
        %v553 = vunpack.c.h.b16 %v394
        %v554 = vunpack.c.l.b16 %v395
        %v555 = vunpack.c.h.b16 %v395
        %v556 = vunpack.c.l.b16 %v396
        %v557 = vunpack.c.h.b16 %v396
        %v558 = vunpack.c.l.b16 %v397
        %v559 = vunpack.c.h.b16 %v397
        %v560 = vunpack.c.l.b16 %v398
        %v561 = vunpack.c.h.b16 %v398
        %v562 = vunpack.c.l.b16 %v399
        %v563 = vunpack.c.h.b16 %v399
        %v564 = vunpack.c.l.b16 %v400
        %v565 = vunpack.c.h.b16 %v400
        %v566 = vunpack.c.l.b16 %v401
        %v567 = vunpack.c.h.b16 %v401
        %v568 = vunpack.c.l.b16 %v402
        %v569 = vunpack.c.h.b16 %v402
        %v570 = vunpack.c.l.b16 %v403
        %v571 = vunpack.c.h.b16 %v403
        %v572 = vunpack.c.l.b16 %v404
        %v573 = vunpack.c.h.b16 %v404
        %v574 = vunpack.c.l.b16 %v405
        %v575 = vunpack.c.h.b16 %v405
        %v576 = vunpack.c.l.b16 %v406
        %v577 = vunpack.c.h.b16 %v406
        %v578 = vunpack.c.l.b16 %v407
        %v579 = vunpack.c.h.b16 %v407
        %v580 = vunpack.c.l.b16 %v408
        %v581 = vunpack.c.h.b16 %v408
        %v582 = vunpack.c.l.b16 %v409
        %v583 = vunpack.c.h.b16 %v409
        %v584 = vunpack.c.l.b16 %v410
        %v585 = vunpack.c.h.b16 %v410
        %v586 = vunpack.c.l.b16 %v411
        %v587 = vunpack.c.h.b16 %v411
        %v588 = vunpack.c.l.b16 %v412
        %v589 = vunpack.c.h.b16 %v412
        %v590 = vunpack.c.l.b16 %v413
        %v591 = vunpack.c.h.b16 %v413
        %v592 = vunpack.c.l.b16 %v414
        %v593 = vunpack.c.h.b16 %v414
        %v594 = vunpack.c.l.b16 %v415
        %v595 = vunpack.c.h.b16 %v415
        %v596 = vunpack.c.l.b16 %v416
        %v597 = vunpack.c.h.b16 %v416
        %v598 = vunpack.c.l.b16 %v417
        %v599 = vunpack.c.h.b16 %v417
        %v600 = vunpack.c.l.b16 %v418
        %v601 = vunpack.c.h.b16 %v418
        %v602 = vunpack.c.l.b16 %v419
        %v603 = vunpack.c.h.b16 %v419
        %v604 = vunpack.c.l.b16 %v420
        %v605 = vunpack.c.h.b16 %v420
        %v606 = vunpack.c.l.b16 %v421
        %v607 = vunpack.c.h.b16 %v421
        %v608 = vunpack.c.l.b16 %v422
        %v609 = vunpack.c.h.b16 %v422
        %v610 = vunpack.c.l.b16 %v423
        %v611 = vunpack.c.h.b16 %v423
        %v612 = vunpack.c.l.b16 %v424
        %v613 = vunpack.c.h.b16 %v424
        %v614 = vunpack.c.l.b16 %v425
        %v615 = vunpack.c.h.b16 %v425
        %v616 = vunpack.c.l.b16 %v426
        %v617 = vunpack.c.h.b16 %v426
        %v618 = vunpack.c.l.b16 %v427
        %v619 = vunpack.c.h.b16 %v427
        %v620 = vunpack.c.l.b16 %v428
        %v621 = vunpack.c.h.b16 %v428
        %v622 = vunpack.c.l.b16 %v429
        %v623 = vunpack.c.h.b16 %v429
        %v624 = vunpack.c.l.b16 %v430
        %v625 = vunpack.c.h.b16 %v430
        %v626 = vunpack.c.l.b16 %v431
        %v627 = vunpack.c.h.b16 %v431
        %v628 = vunpack.c.l.b16 %v432
        %v629 = vunpack.c.h.b16 %v432
        %v630 = vunpack.c.l.b16 %v433
        %v631 = vunpack.c.h.b16 %v433
        %v632 = vpack.c.b16 %v506, %v504
        %v633 = vpack.c.b16 %v507, %v505
        %v634 = vpack.c.b16 %v510, %v508
        %v635 = vpack.c.b16 %v511, %v509
        %v636 = vpack.c.b16 %v514, %v512
        %v637 = vpack.c.b16 %v515, %v513
        %v638 = vpack.c.b16 %v518, %v516
        %v639 = vpack.c.b16 %v519, %v517
        %v640 = vpack.c.b16 %v522, %v520
        %v641 = vpack.c.b16 %v523, %v521
        %v642 = vpack.c.b16 %v526, %v524
        %v643 = vpack.c.b16 %v527, %v525
        %v644 = vpack.c.b16 %v530, %v528
        %v645 = vpack.c.b16 %v531, %v529
        %v646 = vpack.c.b16 %v534, %v532
        %v647 = vpack.c.b16 %v535, %v533
        %v648 = vpack.c.b16 %v538, %v536
        %v649 = vpack.c.b16 %v539, %v537
        %v650 = vpack.c.b16 %v542, %v540
        %v651 = vpack.c.b16 %v543, %v541
        %v652 = vpack.c.b16 %v546, %v544
        %v653 = vpack.c.b16 %v547, %v545
        %v654 = vpack.c.b16 %v550, %v548
        %v655 = vpack.c.b16 %v551, %v549
        %v656 = vpack.c.b16 %v554, %v552
        %v657 = vpack.c.b16 %v555, %v553
        %v658 = vpack.c.b16 %v558, %v556
        %v659 = vpack.c.b16 %v559, %v557
        %v660 = vpack.c.b16 %v562, %v560
        %v661 = vpack.c.b16 %v563, %v561
        %v662 = vpack.c.b16 %v566, %v564
        %v663 = vpack.c.b16 %v567, %v565
        %v664 = vpack.c.b16 %v570, %v568
        %v665 = vpack.c.b16 %v571, %v569
        %v666 = vpack.c.b16 %v574, %v572
        %v667 = vpack.c.b16 %v575, %v573
        %v668 = vpack.c.b16 %v578, %v576
        %v669 = vpack.c.b16 %v579, %v577
        %v670 = vpack.c.b16 %v582, %v580
        %v671 = vpack.c.b16 %v583, %v581
        %v672 = vpack.c.b16 %v586, %v584
        %v673 = vpack.c.b16 %v587, %v585
        %v674 = vpack.c.b16 %v590, %v588
        %v675 = vpack.c.b16 %v591, %v589
        %v676 = vpack.c.b16 %v594, %v592
        %v677 = vpack.c.b16 %v595, %v593
        %v678 = vpack.c.b16 %v598, %v596
        %v679 = vpack.c.b16 %v599, %v597
        %v680 = vpack.c.b16 %v602, %v600
        %v681 = vpack.c.b16 %v603, %v601
        %v682 = vpack.c.b16 %v606, %v604
        %v683 = vpack.c.b16 %v607, %v605
        %v684 = vpack.c.b16 %v610, %v608
        %v685 = vpack.c.b16 %v611, %v609
        %v686 = vpack.c.b16 %v614, %v612
        %v687 = vpack.c.b16 %v615, %v613
        %v688 = vpack.c.b16 %v618, %v616
        %v689 = vpack.c.b16 %v619, %v617
        %v690 = vpack.c.b16 %v622, %v620
        %v691 = vpack.c.b16 %v623, %v621
        %v692 = vpack.c.b16 %v626, %v624
        %v693 = vpack.c.b16 %v627, %v625
        %v694 = vpack.c.b16 %v630, %v628
        %v695 = vpack.c.b16 %v631, %v629
        %760 = vmatpush.bf16.msra.mxu0 %v646
        %761 = vmatpush.bf16.msra.mxu0 %v644
        %762 = vmatpush.bf16.msra.mxu0 %v642
        %763 = vmatpush.bf16.msra.mxu0 %v640
        %764 = vmatpush.bf16.msra.mxu0 %v638
        %765 = vmatpush.bf16.msra.mxu0 %v636
        %766 = vmatpush.bf16.msra.mxu0 %v634
        %767 = vmatpush.bf16.msra.mxu0 %v632
        %768 = vmatmul.bf16.gmra.mxu0 %v350
        %v769 = vpop.f32.mrf.mxu0
        %v770 = vadd.f32 %v436, %v769
        %v771 = vpop.f32.mrf.mxu0
        %v772 = vadd.f32 %v436, %v771
        %773 = vmatmul.bf16.gmra.mxu0 %v354
        %v774 = vpop.f32.mrf.mxu0
        %v775 = vadd.f32 %v436, %v774
        %v776 = vpop.f32.mrf.mxu0
        %v777 = vadd.f32 %v436, %v776
        %778 = vmatmul.bf16.gmra.mxu0 %v358
        %v779 = vpop.f32.mrf.mxu0
        %v780 = vadd.f32 %v436, %v779
        %v781 = vpop.f32.mrf.mxu0
        %v782 = vadd.f32 %v436, %v781
        %783 = vmatmul.bf16.gmra.mxu0 %v362
        %v784 = vpop.f32.mrf.mxu0
        %v785 = vadd.f32 %v436, %v784
        %v786 = vpop.f32.mrf.mxu0
        %v787 = vadd.f32 %v436, %v786
        %788 = vmatmul.bf16.gmra.mxu0 %v366
        %v789 = vpop.f32.mrf.mxu0
        %v790 = vadd.f32 %v436, %v789
        %v791 = vpop.f32.mrf.mxu0
        %v792 = vadd.f32 %v436, %v791
        %793 = vdwg.mxu0
        %794 = vmatpush.bf16.msra.mxu0 %v662
        %795 = vmatpush.bf16.msra.mxu0 %v660
        %796 = vmatpush.bf16.msra.mxu0 %v658
        %797 = vmatpush.bf16.msra.mxu0 %v656
        %798 = vmatpush.bf16.msra.mxu0 %v654
        %799 = vmatpush.bf16.msra.mxu0 %v652
        %800 = vmatpush.bf16.msra.mxu0 %v650
        %801 = vmatpush.bf16.msra.mxu0 %v648
        %802 = vmatmul.bf16.gmra.mxu0 %v351
        %v803 = vpop.f32.mrf.mxu0
        %v804 = vadd.f32 %v770, %v803
        %v805 = vpop.f32.mrf.mxu0
        %v806 = vadd.f32 %v772, %v805
        %807 = vmatmul.bf16.gmra.mxu0 %v355
        %v808 = vpop.f32.mrf.mxu0
        %v809 = vadd.f32 %v775, %v808
        %v810 = vpop.f32.mrf.mxu0
        %v811 = vadd.f32 %v777, %v810
        %812 = vmatmul.bf16.gmra.mxu0 %v359
        %v813 = vpop.f32.mrf.mxu0
        %v814 = vadd.f32 %v780, %v813
        %v815 = vpop.f32.mrf.mxu0
        %v816 = vadd.f32 %v782, %v815
        %817 = vmatmul.bf16.gmra.mxu0 %v363
        %v818 = vpop.f32.mrf.mxu0
        %v819 = vadd.f32 %v785, %v818
        %v820 = vpop.f32.mrf.mxu0
        %v821 = vadd.f32 %v787, %v820
        %822 = vmatmul.bf16.gmra.mxu0 %v367
        %v823 = vpop.f32.mrf.mxu0
        %v824 = vadd.f32 %v790, %v823
        %v825 = vpop.f32.mrf.mxu0
        %v826 = vadd.f32 %v792, %v825
        %827 = vdwg.mxu0
        %828 = vmatpush.bf16.msra.mxu0 %v678
        %829 = vmatpush.bf16.msra.mxu0 %v676
        %830 = vmatpush.bf16.msra.mxu0 %v674
        %831 = vmatpush.bf16.msra.mxu0 %v672
        %832 = vmatpush.bf16.msra.mxu0 %v670
        %833 = vmatpush.bf16.msra.mxu0 %v668
        %834 = vmatpush.bf16.msra.mxu0 %v666
        %835 = vmatpush.bf16.msra.mxu0 %v664
        %836 = vmatmul.bf16.gmra.mxu0 %v352
        %v837 = vpop.f32.mrf.mxu0
        %v838 = vadd.f32 %v804, %v837
        %v839 = vpop.f32.mrf.mxu0
        %v840 = vadd.f32 %v806, %v839
        %841 = vmatmul.bf16.gmra.mxu0 %v356
        %v842 = vpop.f32.mrf.mxu0
        %v843 = vadd.f32 %v809, %v842
        %v844 = vpop.f32.mrf.mxu0
        %v845 = vadd.f32 %v811, %v844
        %846 = vmatmul.bf16.gmra.mxu0 %v360
        %v847 = vpop.f32.mrf.mxu0
        %v848 = vadd.f32 %v814, %v847
        %v849 = vpop.f32.mrf.mxu0
        %v850 = vadd.f32 %v816, %v849
        %851 = vmatmul.bf16.gmra.mxu0 %v364
        %v852 = vpop.f32.mrf.mxu0
        %v853 = vadd.f32 %v819, %v852
        %v854 = vpop.f32.mrf.mxu0
        %v855 = vadd.f32 %v821, %v854
        %856 = vmatmul.bf16.gmra.mxu0 %v368
        %v857 = vpop.f32.mrf.mxu0
        %v858 = vadd.f32 %v824, %v857
        %v859 = vpop.f32.mrf.mxu0
        %v860 = vadd.f32 %v826, %v859
        %861 = vdwg.mxu0
        %862 = vmatpush.bf16.msra.mxu0 %v694
        %863 = vmatpush.bf16.msra.mxu0 %v692
        %864 = vmatpush.bf16.msra.mxu0 %v690
        %865 = vmatpush.bf16.msra.mxu0 %v688
        %866 = vmatpush.bf16.msra.mxu0 %v686
        %867 = vmatpush.bf16.msra.mxu0 %v684
        %868 = vmatpush.bf16.msra.mxu0 %v682
        %869 = vmatpush.bf16.msra.mxu0 %v680
        %870 = vmatmul.bf16.gmra.mxu0 %v353
        %v871 = vpop.f32.mrf.mxu0
        %v872 = vadd.f32 %v838, %v871
        %v873 = vpop.f32.mrf.mxu0
        %v874 = vadd.f32 %v840, %v873
        %875 = vmatmul.bf16.gmra.mxu0 %v357
        %v876 = vpop.f32.mrf.mxu0
        %v877 = vadd.f32 %v843, %v876
        %v878 = vpop.f32.mrf.mxu0
        %v879 = vadd.f32 %v845, %v878
        %880 = vmatmul.bf16.gmra.mxu0 %v361
        %v881 = vpop.f32.mrf.mxu0
        %v882 = vadd.f32 %v848, %v881
        %v883 = vpop.f32.mrf.mxu0
        %v884 = vadd.f32 %v850, %v883
        %885 = vmatmul.bf16.gmra.mxu0 %v365
        %v886 = vpop.f32.mrf.mxu0
        %v887 = vadd.f32 %v853, %v886
        %v888 = vpop.f32.mrf.mxu0
        %v889 = vadd.f32 %v855, %v888
        %890 = vmatmul.bf16.gmra.mxu0 %v369
        %v891 = vpop.f32.mrf.mxu0
        %v892 = vadd.f32 %v858, %v891
        %v893 = vpop.f32.mrf.mxu0
        %v894 = vadd.f32 %v860, %v893
        %895 = vdwg.mxu0
        %896 = vmatpush.bf16.msra.mxu0 %v647
        %897 = vmatpush.bf16.msra.mxu0 %v645
        %898 = vmatpush.bf16.msra.mxu0 %v643
        %899 = vmatpush.bf16.msra.mxu0 %v641
        %900 = vmatpush.bf16.msra.mxu0 %v639
        %901 = vmatpush.bf16.msra.mxu0 %v637
        %902 = vmatpush.bf16.msra.mxu0 %v635
        %903 = vmatpush.bf16.msra.mxu0 %v633
        %904 = vmatmul.bf16.gmra.mxu0 %v350
        %v905 = vpop.f32.mrf.mxu0
        %v906 = vadd.f32 %v437, %v905
        %v907 = vpop.f32.mrf.mxu0
        %v908 = vadd.f32 %v437, %v907
        %909 = vmatmul.bf16.gmra.mxu0 %v354
        %v910 = vpop.f32.mrf.mxu0
        %v911 = vadd.f32 %v437, %v910
        %v912 = vpop.f32.mrf.mxu0
        %v913 = vadd.f32 %v437, %v912
        %914 = vmatmul.bf16.gmra.mxu0 %v358
        %v915 = vpop.f32.mrf.mxu0
        %v916 = vadd.f32 %v437, %v915
        %v917 = vpop.f32.mrf.mxu0
        %v918 = vadd.f32 %v437, %v917
        %919 = vmatmul.bf16.gmra.mxu0 %v362
        %v920 = vpop.f32.mrf.mxu0
        %v921 = vadd.f32 %v437, %v920
        %v922 = vpop.f32.mrf.mxu0
        %v923 = vadd.f32 %v437, %v922
        %924 = vmatmul.bf16.gmra.mxu0 %v366
        %v925 = vpop.f32.mrf.mxu0
        %v926 = vadd.f32 %v437, %v925
        %v927 = vpop.f32.mrf.mxu0
        %v928 = vadd.f32 %v437, %v927
        %929 = vdwg.mxu0
        %930 = vmatpush.bf16.msra.mxu0 %v663
        %931 = vmatpush.bf16.msra.mxu0 %v661
        %932 = vmatpush.bf16.msra.mxu0 %v659
        %933 = vmatpush.bf16.msra.mxu0 %v657
        %934 = vmatpush.bf16.msra.mxu0 %v655
        %935 = vmatpush.bf16.msra.mxu0 %v653
        %936 = vmatpush.bf16.msra.mxu0 %v651
        %937 = vmatpush.bf16.msra.mxu0 %v649
        %938 = vmatmul.bf16.gmra.mxu0 %v351
        %v939 = vpop.f32.mrf.mxu0
        %v940 = vadd.f32 %v906, %v939
        %v941 = vpop.f32.mrf.mxu0
        %v942 = vadd.f32 %v908, %v941
        %943 = vmatmul.bf16.gmra.mxu0 %v355
        %v944 = vpop.f32.mrf.mxu0
        %v945 = vadd.f32 %v911, %v944
        %v946 = vpop.f32.mrf.mxu0
        %v947 = vadd.f32 %v913, %v946
        %948 = vmatmul.bf16.gmra.mxu0 %v359
        %v949 = vpop.f32.mrf.mxu0
        %v950 = vadd.f32 %v916, %v949
        %v951 = vpop.f32.mrf.mxu0
        %v952 = vadd.f32 %v918, %v951
        %953 = vmatmul.bf16.gmra.mxu0 %v363
        %v954 = vpop.f32.mrf.mxu0
        %v955 = vadd.f32 %v921, %v954
        %v956 = vpop.f32.mrf.mxu0
        %v957 = vadd.f32 %v923, %v956
        %958 = vmatmul.bf16.gmra.mxu0 %v367
        %v959 = vpop.f32.mrf.mxu0
        %v960 = vadd.f32 %v926, %v959
        %v961 = vpop.f32.mrf.mxu0
        %v962 = vadd.f32 %v928, %v961
        %963 = vdwg.mxu0
        %964 = vmatpush.bf16.msra.mxu0 %v679
        %965 = vmatpush.bf16.msra.mxu0 %v677
        %966 = vmatpush.bf16.msra.mxu0 %v675
        %967 = vmatpush.bf16.msra.mxu0 %v673
        %968 = vmatpush.bf16.msra.mxu0 %v671
        %969 = vmatpush.bf16.msra.mxu0 %v669
        %970 = vmatpush.bf16.msra.mxu0 %v667
        %971 = vmatpush.bf16.msra.mxu0 %v665
        %972 = vmatmul.bf16.gmra.mxu0 %v352
        %v973 = vpop.f32.mrf.mxu0
        %v974 = vadd.f32 %v940, %v973
        %v975 = vpop.f32.mrf.mxu0
        %v976 = vadd.f32 %v942, %v975
        %977 = vmatmul.bf16.gmra.mxu0 %v356
        %v978 = vpop.f32.mrf.mxu0
        %v979 = vadd.f32 %v945, %v978
        %v980 = vpop.f32.mrf.mxu0
        %v981 = vadd.f32 %v947, %v980
        %982 = vmatmul.bf16.gmra.mxu0 %v360
        %v983 = vpop.f32.mrf.mxu0
        %v984 = vadd.f32 %v950, %v983
        %v985 = vpop.f32.mrf.mxu0
        %v986 = vadd.f32 %v952, %v985
        %987 = vmatmul.bf16.gmra.mxu0 %v364
        %v988 = vpop.f32.mrf.mxu0
        %v989 = vadd.f32 %v955, %v988
        %v990 = vpop.f32.mrf.mxu0
        %v991 = vadd.f32 %v957, %v990
        %992 = vmatmul.bf16.gmra.mxu0 %v368
        %v993 = vpop.f32.mrf.mxu0
        %v994 = vadd.f32 %v960, %v993
        %v995 = vpop.f32.mrf.mxu0
        %v996 = vadd.f32 %v962, %v995
        %997 = vdwg.mxu0
        %998 = vmatpush.bf16.msra.mxu0 %v695
        %999 = vmatpush.bf16.msra.mxu0 %v693
        %1000 = vmatpush.bf16.msra.mxu0 %v691
        %1001 = vmatpush.bf16.msra.mxu0 %v689
        %1002 = vmatpush.bf16.msra.mxu0 %v687
        %1003 = vmatpush.bf16.msra.mxu0 %v685
        %1004 = vmatpush.bf16.msra.mxu0 %v683
        %1005 = vmatpush.bf16.msra.mxu0 %v681
        %1006 = vmatmul.bf16.gmra.mxu0 %v353
        %v1007 = vpop.f32.mrf.mxu0
        %v1008 = vadd.f32 %v974, %v1007
        %v1009 = vpop.f32.mrf.mxu0
        %v1010 = vadd.f32 %v976, %v1009
        %1011 = vmatmul.bf16.gmra.mxu0 %v357
        %v1012 = vpop.f32.mrf.mxu0
        %v1013 = vadd.f32 %v979, %v1012
        %v1014 = vpop.f32.mrf.mxu0
        %v1015 = vadd.f32 %v981, %v1014
        %1016 = vmatmul.bf16.gmra.mxu0 %v361
        %v1017 = vpop.f32.mrf.mxu0
        %v1018 = vadd.f32 %v984, %v1017
        %v1019 = vpop.f32.mrf.mxu0
        %v1020 = vadd.f32 %v986, %v1019
        %1021 = vmatmul.bf16.gmra.mxu0 %v365
        %v1022 = vpop.f32.mrf.mxu0
        %v1023 = vadd.f32 %v989, %v1022
        %v1024 = vpop.f32.mrf.mxu0
        %v1025 = vadd.f32 %v991, %v1024
        %1026 = vmatmul.bf16.gmra.mxu0 %v369
        %v1027 = vpop.f32.mrf.mxu0
        %v1028 = vadd.f32 %v994, %v1027
        %v1029 = vpop.f32.mrf.mxu0
        %v1030 = vadd.f32 %v996, %v1029
        %1031 = vdwg.mxu0
        %v1032 = vmax.f32 %v872, 0.0
        %v1033 = vmax.f32 %v1008, 0.0
        %v1034 = vmax.f32 %v874, 0.0
        %v1035 = vmax.f32 %v1010, 0.0
        %v1036 = vmax.f32 %v877, 0.0
        %v1037 = vmax.f32 %v1013, 0.0
        %v1038 = vmax.f32 %v879, 0.0
        %v1039 = vmax.f32 %v1015, 0.0
        %v1040 = vmax.f32 %v882, 0.0
        %v1041 = vmax.f32 %v1018, 0.0
        %v1042 = vmax.f32 %v884, 0.0
        %v1043 = vmax.f32 %v1020, 0.0
        %v1044 = vmax.f32 %v887, 0.0
        %v1045 = vmax.f32 %v1023, 0.0
        %v1046 = vmax.f32 %v889, 0.0
        %v1047 = vmax.f32 %v1025, 0.0
        %v1048 = vmax.f32 %v892, 0.0
        %v1049 = vmax.f32 %v1028, 0.0
        %v1050 = vmax.f32 %v894, 0.0
        %v1051 = vmax.f32 %v1030, 0.0
        %v1052 = vpack.c.bf16 %v1034, %v1032
        %v1053 = vpack.c.bf16 %v1035, %v1033
        %v1054 = vpack.c.bf16 %v1038, %v1036
        %v1055 = vpack.c.bf16 %v1039, %v1037
        %v1056 = vpack.c.bf16 %v1042, %v1040
        %v1057 = vpack.c.bf16 %v1043, %v1041
        %v1058 = vpack.c.bf16 %v1046, %v1044
        %v1059 = vpack.c.bf16 %v1047, %v1045
        %v1060 = vpack.c.bf16 %v1050, %v1048
        %v1061 = vpack.c.bf16 %v1051, %v1049
        %v1062 = vld [vmem:[#allocation8] sm:$0xff]
        %v1063 = vld [vmem:[#allocation8 + $0x8] sm:$0xff]
        %v1064 = vld [vmem:[#allocation8 + $0x10] sm:$0xff]
        %v1065 = vld [vmem:[#allocation8 + $0x18] sm:$0xff]
        %v1066 = vld [vmem:[#allocation8 + $0x20] sm:$0xff]
        %v1067 = vld [vmem:[#allocation8 + $0x28] sm:$0xff]
        %v1068 = vld [vmem:[#allocation8 + $0x30] sm:$0xff]
        %v1069 = vld [vmem:[#allocation8 + $0x38] sm:$0xff]
        %v1070 = vld [vmem:[#allocation8 + $0x40] sm:$0xff]
        %v1071 = vld [vmem:[#allocation8 + $0x48] sm:$0xff]
        %v1072 = vld [vmem:[#allocation8 + $0x50] sm:$0xff]
        %v1073 = vld [vmem:[#allocation8 + $0x58] sm:$0xff]
        %v1074 = vld [vmem:[#allocation8 + $0x60] sm:$0xff]
        %v1075 = vld [vmem:[#allocation8 + $0x68] sm:$0xff]
        %v1076 = vld [vmem:[#allocation8 + $0x70] sm:$0xff]
        %v1077 = vld [vmem:[#allocation8 + $0x78] sm:$0xff]
        %v1078 = vld [vmem:[#allocation8 + $0x80] sm:$0xff]
        %v1079 = vld [vmem:[#allocation8 + $0x88] sm:$0xff]
        %v1080 = vld [vmem:[#allocation8 + $0x90] sm:$0xff]
        %v1081 = vld [vmem:[#allocation8 + $0x98] sm:$0xff]
        %v1082 = vld [vmem:[#allocation8 + $0xa0] sm:$0xff]
        %v1083 = vld [vmem:[#allocation8 + $0xa8] sm:$0xff]
        %v1084 = vld [vmem:[#allocation8 + $0xb0] sm:$0xff]
        %v1085 = vld [vmem:[#allocation8 + $0xb8] sm:$0xff]
        %v1086 = vld [vmem:[#allocation8 + $0xc0] sm:$0xff]
        %v1087 = vld [vmem:[#allocation8 + $0xc8] sm:$0xff]
        %v1088 = vld [vmem:[#allocation8 + $0xd0] sm:$0xff]
        %v1089 = vld [vmem:[#allocation8 + $0xd8] sm:$0xff]
        %v1090 = vld [vmem:[#allocation8 + $0xe0] sm:$0xff]
        %v1091 = vld [vmem:[#allocation8 + $0xe8] sm:$0xff]
        %v1092 = vld [vmem:[#allocation8 + $0xf0] sm:$0xff]
        %v1093 = vld [vmem:[#allocation8 + $0xf8] sm:$0xff]
        %v1094 = vld [vmem:[#allocation8 + $0x100] sm:$0xff]
        %v1095 = vld [vmem:[#allocation8 + $0x108] sm:$0xff]
        %v1096 = vld [vmem:[#allocation8 + $0x110] sm:$0xff]
        %v1097 = vld [vmem:[#allocation8 + $0x118] sm:$0xff]
        %v1098 = vld [vmem:[#allocation8 + $0x120] sm:$0xff]
        %v1099 = vld [vmem:[#allocation8 + $0x128] sm:$0xff]
        %v1100 = vld [vmem:[#allocation8 + $0x130] sm:$0xff]
        %v1101 = vld [vmem:[#allocation8 + $0x138] sm:$0xff]
        %v1102 = vld [vmem:[#allocation8 + $0x140] sm:$0xff]
        %v1103 = vld [vmem:[#allocation8 + $0x148] sm:$0xff]
        %v1104 = vld [vmem:[#allocation8 + $0x150] sm:$0xff]
        %v1105 = vld [vmem:[#allocation8 + $0x158] sm:$0xff]
        %v1106 = vld [vmem:[#allocation8 + $0x160] sm:$0xff]
        %v1107 = vld [vmem:[#allocation8 + $0x168] sm:$0xff]
        %v1108 = vld [vmem:[#allocation8 + $0x170] sm:$0xff]
        %v1109 = vld [vmem:[#allocation8 + $0x178] sm:$0xff]
        %v1110 = vld [vmem:[#allocation8 + $0x180] sm:$0xff]
        %v1111 = vld [vmem:[#allocation8 + $0x188] sm:$0xff]
        %v1112 = vld [vmem:[#allocation8 + $0x190] sm:$0xff]
        %v1113 = vld [vmem:[#allocation8 + $0x198] sm:$0xff]
        %v1114 = vld [vmem:[#allocation8 + $0x1a0] sm:$0xff]
        %v1115 = vld [vmem:[#allocation8 + $0x1a8] sm:$0xff]
        %v1116 = vld [vmem:[#allocation8 + $0x1b0] sm:$0xff]
        %v1117 = vld [vmem:[#allocation8 + $0x1b8] sm:$0xff]
        %v1118 = vld [vmem:[#allocation8 + $0x1c0] sm:$0xff]
        %v1119 = vld [vmem:[#allocation8 + $0x1c8] sm:$0xff]
        %v1120 = vld [vmem:[#allocation8 + $0x1d0] sm:$0xff]
        %v1121 = vld [vmem:[#allocation8 + $0x1d8] sm:$0xff]
        %v1122 = vld [vmem:[#allocation8 + $0x1e0] sm:$0xff]
        %v1123 = vld [vmem:[#allocation8 + $0x1e8] sm:$0xff]
        %v1124 = vld [vmem:[#allocation8 + $0x1f0] sm:$0xff]
        %v1125 = vld [vmem:[#allocation8 + $0x1f8] sm:$0xff]
        %v1126 = vld [vmem:[#allocation10] sm:$0xf]
        %v1128 = vperm.slane %v1126, 0
        %v1129 = vperm.slane %v1126, 1
        %v1130 = vperm.slane %v1126, 2
        %v1131 = vperm.slane %v1126, 3
        %v1200 = vunpack.c.l.b16 %v1062
        %v1201 = vunpack.c.h.b16 %v1062
        %v1202 = vunpack.c.l.b16 %v1063
        %v1203 = vunpack.c.h.b16 %v1063
        %v1204 = vunpack.c.l.b16 %v1064
        %v1205 = vunpack.c.h.b16 %v1064
        %v1206 = vunpack.c.l.b16 %v1065
        %v1207 = vunpack.c.h.b16 %v1065
        %v1208 = vunpack.c.l.b16 %v1066
        %v1209 = vunpack.c.h.b16 %v1066
        %v1210 = vunpack.c.l.b16 %v1067
        %v1211 = vunpack.c.h.b16 %v1067
        %v1212 = vunpack.c.l.b16 %v1068
        %v1213 = vunpack.c.h.b16 %v1068
        %v1214 = vunpack.c.l.b16 %v1069
        %v1215 = vunpack.c.h.b16 %v1069
        %v1216 = vunpack.c.l.b16 %v1070
        %v1217 = vunpack.c.h.b16 %v1070
        %v1218 = vunpack.c.l.b16 %v1071
        %v1219 = vunpack.c.h.b16 %v1071
        %v1220 = vunpack.c.l.b16 %v1072
        %v1221 = vunpack.c.h.b16 %v1072
        %v1222 = vunpack.c.l.b16 %v1073
        %v1223 = vunpack.c.h.b16 %v1073
        %v1224 = vunpack.c.l.b16 %v1074
        %v1225 = vunpack.c.h.b16 %v1074
        %v1226 = vunpack.c.l.b16 %v1075
        %v1227 = vunpack.c.h.b16 %v1075
        %v1228 = vunpack.c.l.b16 %v1076
        %v1229 = vunpack.c.h.b16 %v1076
        %v1230 = vunpack.c.l.b16 %v1077
        %v1231 = vunpack.c.h.b16 %v1077
        %v1232 = vunpack.c.l.b16 %v1078
        %v1233 = vunpack.c.h.b16 %v1078
        %v1234 = vunpack.c.l.b16 %v1079
        %v1235 = vunpack.c.h.b16 %v1079
        %v1236 = vunpack.c.l.b16 %v1080
        %v1237 = vunpack.c.h.b16 %v1080
        %v1238 = vunpack.c.l.b16 %v1081
        %v1239 = vunpack.c.h.b16 %v1081
        %v1240 = vunpack.c.l.b16 %v1082
        %v1241 = vunpack.c.h.b16 %v1082
        %v1242 = vunpack.c.l.b16 %v1083
        %v1243 = vunpack.c.h.b16 %v1083
        %v1244 = vunpack.c.l.b16 %v1084
        %v1245 = vunpack.c.h.b16 %v1084
        %v1246 = vunpack.c.l.b16 %v1085
        %v1247 = vunpack.c.h.b16 %v1085
        %v1248 = vunpack.c.l.b16 %v1086
        %v1249 = vunpack.c.h.b16 %v1086
        %v1250 = vunpack.c.l.b16 %v1087
        %v1251 = vunpack.c.h.b16 %v1087
        %v1252 = vunpack.c.l.b16 %v1088
        %v1253 = vunpack.c.h.b16 %v1088
        %v1254 = vunpack.c.l.b16 %v1089
        %v1255 = vunpack.c.h.b16 %v1089
        %v1256 = vunpack.c.l.b16 %v1090
        %v1257 = vunpack.c.h.b16 %v1090
        %v1258 = vunpack.c.l.b16 %v1091
        %v1259 = vunpack.c.h.b16 %v1091
        %v1260 = vunpack.c.l.b16 %v1092
        %v1261 = vunpack.c.h.b16 %v1092
        %v1262 = vunpack.c.l.b16 %v1093
        %v1263 = vunpack.c.h.b16 %v1093
        %v1264 = vunpack.c.l.b16 %v1094
        %v1265 = vunpack.c.h.b16 %v1094
        %v1266 = vunpack.c.l.b16 %v1095
        %v1267 = vunpack.c.h.b16 %v1095
        %v1268 = vunpack.c.l.b16 %v1096
        %v1269 = vunpack.c.h.b16 %v1096
        %v1270 = vunpack.c.l.b16 %v1097
        %v1271 = vunpack.c.h.b16 %v1097
        %v1272 = vunpack.c.l.b16 %v1098
        %v1273 = vunpack.c.h.b16 %v1098
        %v1274 = vunpack.c.l.b16 %v1099
        %v1275 = vunpack.c.h.b16 %v1099
        %v1276 = vunpack.c.l.b16 %v1100
        %v1277 = vunpack.c.h.b16 %v1100
        %v1278 = vunpack.c.l.b16 %v1101
        %v1279 = vunpack.c.h.b16 %v1101
        %v1280 = vunpack.c.l.b16 %v1102
        %v1281 = vunpack.c.h.b16 %v1102
        %v1282 = vunpack.c.l.b16 %v1103
        %v1283 = vunpack.c.h.b16 %v1103
        %v1284 = vunpack.c.l.b16 %v1104
        %v1285 = vunpack.c.h.b16 %v1104
        %v1286 = vunpack.c.l.b16 %v1105
        %v1287 = vunpack.c.h.b16 %v1105
        %v1288 = vunpack.c.l.b16 %v1106
        %v1289 = vunpack.c.h.b16 %v1106
        %v1290 = vunpack.c.l.b16 %v1107
        %v1291 = vunpack.c.h.b16 %v1107
        %v1292 = vunpack.c.l.b16 %v1108
        %v1293 = vunpack.c.h.b16 %v1108
        %v1294 = vunpack.c.l.b16 %v1109
        %v1295 = vunpack.c.h.b16 %v1109
        %v1296 = vunpack.c.l.b16 %v1110
        %v1297 = vunpack.c.h.b16 %v1110
        %v1298 = vunpack.c.l.b16 %v1111
        %v1299 = vunpack.c.h.b16 %v1111
        %v1300 = vunpack.c.l.b16 %v1112
        %v1301 = vunpack.c.h.b16 %v1112
        %v1302 = vunpack.c.l.b16 %v1113
        %v1303 = vunpack.c.h.b16 %v1113
        %v1304 = vunpack.c.l.b16 %v1114
        %v1305 = vunpack.c.h.b16 %v1114
        %v1306 = vunpack.c.l.b16 %v1115
        %v1307 = vunpack.c.h.b16 %v1115
        %v1308 = vunpack.c.l.b16 %v1116
        %v1309 = vunpack.c.h.b16 %v1116
        %v1310 = vunpack.c.l.b16 %v1117
        %v1311 = vunpack.c.h.b16 %v1117
        %v1312 = vunpack.c.l.b16 %v1118
        %v1313 = vunpack.c.h.b16 %v1118
        %v1314 = vunpack.c.l.b16 %v1119
        %v1315 = vunpack.c.h.b16 %v1119
        %v1316 = vunpack.c.l.b16 %v1120
        %v1317 = vunpack.c.h.b16 %v1120
        %v1318 = vunpack.c.l.b16 %v1121
        %v1319 = vunpack.c.h.b16 %v1121
        %v1320 = vunpack.c.l.b16 %v1122
        %v1321 = vunpack.c.h.b16 %v1122
        %v1322 = vunpack.c.l.b16 %v1123
        %v1323 = vunpack.c.h.b16 %v1123
        %v1324 = vunpack.c.l.b16 %v1124
        %v1325 = vunpack.c.h.b16 %v1124
        %v1326 = vunpack.c.l.b16 %v1125
        %v1327 = vunpack.c.h.b16 %v1125
        %v1328 = vpack.c.b16 %v1204, %v1200
        %v1329 = vpack.c.b16 %v1205, %v1201
        %v1330 = vpack.c.b16 %v1206, %v1202
        %v1331 = vpack.c.b16 %v1207, %v1203
        %v1332 = vpack.c.b16 %v1212, %v1208
        %v1333 = vpack.c.b16 %v1213, %v1209
        %v1334 = vpack.c.b16 %v1214, %v1210
        %v1335 = vpack.c.b16 %v1215, %v1211
        %v1336 = vpack.c.b16 %v1220, %v1216
        %v1337 = vpack.c.b16 %v1221, %v1217
        %v1338 = vpack.c.b16 %v1222, %v1218
        %v1339 = vpack.c.b16 %v1223, %v1219
        %v1340 = vpack.c.b16 %v1228, %v1224
        %v1341 = vpack.c.b16 %v1229, %v1225
        %v1342 = vpack.c.b16 %v1230, %v1226
        %v1343 = vpack.c.b16 %v1231, %v1227
        %v1344 = vpack.c.b16 %v1236, %v1232
        %v1345 = vpack.c.b16 %v1237, %v1233
        %v1346 = vpack.c.b16 %v1238, %v1234
        %v1347 = vpack.c.b16 %v1239, %v1235
        %v1348 = vpack.c.b16 %v1244, %v1240
        %v1349 = vpack.c.b16 %v1245, %v1241
        %v1350 = vpack.c.b16 %v1246, %v1242
        %v1351 = vpack.c.b16 %v1247, %v1243
        %v1352 = vpack.c.b16 %v1252, %v1248
        %v1353 = vpack.c.b16 %v1253, %v1249
        %v1354 = vpack.c.b16 %v1254, %v1250
        %v1355 = vpack.c.b16 %v1255, %v1251
        %v1356 = vpack.c.b16 %v1260, %v1256
        %v1357 = vpack.c.b16 %v1261, %v1257
        %v1358 = vpack.c.b16 %v1262, %v1258
        %v1359 = vpack.c.b16 %v1263, %v1259
        %v1360 = vpack.c.b16 %v1268, %v1264
        %v1361 = vpack.c.b16 %v1269, %v1265
        %v1362 = vpack.c.b16 %v1270, %v1266
        %v1363 = vpack.c.b16 %v1271, %v1267
        %v1364 = vpack.c.b16 %v1276, %v1272
        %v1365 = vpack.c.b16 %v1277, %v1273
        %v1366 = vpack.c.b16 %v1278, %v1274
        %v1367 = vpack.c.b16 %v1279, %v1275
        %v1368 = vpack.c.b16 %v1284, %v1280
        %v1369 = vpack.c.b16 %v1285, %v1281
        %v1370 = vpack.c.b16 %v1286, %v1282
        %v1371 = vpack.c.b16 %v1287, %v1283
        %v1372 = vpack.c.b16 %v1292, %v1288
        %v1373 = vpack.c.b16 %v1293, %v1289
        %v1374 = vpack.c.b16 %v1294, %v1290
        %v1375 = vpack.c.b16 %v1295, %v1291
        %v1376 = vpack.c.b16 %v1300, %v1296
        %v1377 = vpack.c.b16 %v1301, %v1297
        %v1378 = vpack.c.b16 %v1302, %v1298
        %v1379 = vpack.c.b16 %v1303, %v1299
        %v1380 = vpack.c.b16 %v1308, %v1304
        %v1381 = vpack.c.b16 %v1309, %v1305
        %v1382 = vpack.c.b16 %v1310, %v1306
        %v1383 = vpack.c.b16 %v1311, %v1307
        %v1384 = vpack.c.b16 %v1316, %v1312
        %v1385 = vpack.c.b16 %v1317, %v1313
        %v1386 = vpack.c.b16 %v1318, %v1314
        %v1387 = vpack.c.b16 %v1319, %v1315
        %v1388 = vpack.c.b16 %v1324, %v1320
        %v1389 = vpack.c.b16 %v1325, %v1321
        %v1390 = vpack.c.b16 %v1326, %v1322
        %v1391 = vpack.c.b16 %v1327, %v1323
        %1456 = vmatpush.bf16.msra.mxu0 %v1356
        %1457 = vmatpush.bf16.msra.mxu0 %v1352
        %1458 = vmatpush.bf16.msra.mxu0 %v1348
        %1459 = vmatpush.bf16.msra.mxu0 %v1344
        %1460 = vmatpush.bf16.msra.mxu0 %v1340
        %1461 = vmatpush.bf16.msra.mxu0 %v1336
        %1462 = vmatpush.bf16.msra.mxu0 %v1332
        %1463 = vmatpush.bf16.msra.mxu0 %v1328
        %1464 = vmatmul.bf16.gmra.mxu0 %v1052
        %v1465 = vpop.f32.mrf.mxu0
        %v1466 = vadd.f32 %v1128, %v1465
        %v1467 = vpop.f32.mrf.mxu0
        %v1468 = vadd.f32 %v1128, %v1467
        %1469 = vmatmul.bf16.gmra.mxu0 %v1054
        %v1470 = vpop.f32.mrf.mxu0
        %v1471 = vadd.f32 %v1128, %v1470
        %v1472 = vpop.f32.mrf.mxu0
        %v1473 = vadd.f32 %v1128, %v1472
        %1474 = vmatmul.bf16.gmra.mxu0 %v1056
        %v1475 = vpop.f32.mrf.mxu0
        %v1476 = vadd.f32 %v1128, %v1475
        %v1477 = vpop.f32.mrf.mxu0
        %v1478 = vadd.f32 %v1128, %v1477
        %1479 = vmatmul.bf16.gmra.mxu0 %v1058
        %v1480 = vpop.f32.mrf.mxu0
        %v1481 = vadd.f32 %v1128, %v1480
        %v1482 = vpop.f32.mrf.mxu0
        %v1483 = vadd.f32 %v1128, %v1482
        %1484 = vmatmul.bf16.gmra.mxu0 %v1060
        %v1485 = vpop.f32.mrf.mxu0
        %v1486 = vadd.f32 %v1128, %v1485
        %v1487 = vpop.f32.mrf.mxu0
        %v1488 = vadd.f32 %v1128, %v1487
        %1489 = vdwg.mxu0
        %1490 = vmatpush.bf16.msra.mxu0 %v1388
        %1491 = vmatpush.bf16.msra.mxu0 %v1384
        %1492 = vmatpush.bf16.msra.mxu0 %v1380
        %1493 = vmatpush.bf16.msra.mxu0 %v1376
        %1494 = vmatpush.bf16.msra.mxu0 %v1372
        %1495 = vmatpush.bf16.msra.mxu0 %v1368
        %1496 = vmatpush.bf16.msra.mxu0 %v1364
        %1497 = vmatpush.bf16.msra.mxu0 %v1360
        %1498 = vmatmul.bf16.gmra.mxu0 %v1053
        %v1499 = vpop.f32.mrf.mxu0
        %v1500 = vadd.f32 %v1466, %v1499
        %v1501 = vpop.f32.mrf.mxu0
        %v1502 = vadd.f32 %v1468, %v1501
        %1503 = vmatmul.bf16.gmra.mxu0 %v1055
        %v1504 = vpop.f32.mrf.mxu0
        %v1505 = vadd.f32 %v1471, %v1504
        %v1506 = vpop.f32.mrf.mxu0
        %v1507 = vadd.f32 %v1473, %v1506
        %1508 = vmatmul.bf16.gmra.mxu0 %v1057
        %v1509 = vpop.f32.mrf.mxu0
        %v1510 = vadd.f32 %v1476, %v1509
        %v1511 = vpop.f32.mrf.mxu0
        %v1512 = vadd.f32 %v1478, %v1511
        %1513 = vmatmul.bf16.gmra.mxu0 %v1059
        %v1514 = vpop.f32.mrf.mxu0
        %v1515 = vadd.f32 %v1481, %v1514
        %v1516 = vpop.f32.mrf.mxu0
        %v1517 = vadd.f32 %v1483, %v1516
        %1518 = vmatmul.bf16.gmra.mxu0 %v1061
        %v1519 = vpop.f32.mrf.mxu0
        %v1520 = vadd.f32 %v1486, %v1519
        %v1521 = vpop.f32.mrf.mxu0
        %v1522 = vadd.f32 %v1488, %v1521
        %1523 = vdwg.mxu0
        %1524 = vmatpush.bf16.msra.mxu0 %v1357
        %1525 = vmatpush.bf16.msra.mxu0 %v1353
        %1526 = vmatpush.bf16.msra.mxu0 %v1349
        %1527 = vmatpush.bf16.msra.mxu0 %v1345
        %1528 = vmatpush.bf16.msra.mxu0 %v1341
        %1529 = vmatpush.bf16.msra.mxu0 %v1337
        %1530 = vmatpush.bf16.msra.mxu0 %v1333
        %1531 = vmatpush.bf16.msra.mxu0 %v1329
        %1532 = vmatmul.bf16.gmra.mxu0 %v1052
        %v1533 = vpop.f32.mrf.mxu0
        %v1534 = vadd.f32 %v1129, %v1533
        %v1535 = vpop.f32.mrf.mxu0
        %v1536 = vadd.f32 %v1129, %v1535
        %1537 = vmatmul.bf16.gmra.mxu0 %v1054
        %v1538 = vpop.f32.mrf.mxu0
        %v1539 = vadd.f32 %v1129, %v1538
        %v1540 = vpop.f32.mrf.mxu0
        %v1541 = vadd.f32 %v1129, %v1540
        %1542 = vmatmul.bf16.gmra.mxu0 %v1056
        %v1543 = vpop.f32.mrf.mxu0
        %v1544 = vadd.f32 %v1129, %v1543
        %v1545 = vpop.f32.mrf.mxu0
        %v1546 = vadd.f32 %v1129, %v1545
        %1547 = vmatmul.bf16.gmra.mxu0 %v1058
        %v1548 = vpop.f32.mrf.mxu0
        %v1549 = vadd.f32 %v1129, %v1548
        %v1550 = vpop.f32.mrf.mxu0
        %v1551 = vadd.f32 %v1129, %v1550
        %1552 = vmatmul.bf16.gmra.mxu0 %v1060
        %v1553 = vpop.f32.mrf.mxu0
        %v1554 = vadd.f32 %v1129, %v1553
        %v1555 = vpop.f32.mrf.mxu0
        %v1556 = vadd.f32 %v1129, %v1555
        %1557 = vdwg.mxu0
        %1558 = vmatpush.bf16.msra.mxu0 %v1389
        %1559 = vmatpush.bf16.msra.mxu0 %v1385
        %1560 = vmatpush.bf16.msra.mxu0 %v1381
        %1561 = vmatpush.bf16.msra.mxu0 %v1377
        %1562 = vmatpush.bf16.msra.mxu0 %v1373
        %1563 = vmatpush.bf16.msra.mxu0 %v1369
        %1564 = vmatpush.bf16.msra.mxu0 %v1365
        %1565 = vmatpush.bf16.msra.mxu0 %v1361
        %1566 = vmatmul.bf16.gmra.mxu0 %v1053
        %v1567 = vpop.f32.mrf.mxu0
        %v1568 = vadd.f32 %v1534, %v1567
        %v1569 = vpop.f32.mrf.mxu0
        %v1570 = vadd.f32 %v1536, %v1569
        %1571 = vmatmul.bf16.gmra.mxu0 %v1055
        %v1572 = vpop.f32.mrf.mxu0
        %v1573 = vadd.f32 %v1539, %v1572
        %v1574 = vpop.f32.mrf.mxu0
        %v1575 = vadd.f32 %v1541, %v1574
        %1576 = vmatmul.bf16.gmra.mxu0 %v1057
        %v1577 = vpop.f32.mrf.mxu0
        %v1578 = vadd.f32 %v1544, %v1577
        %v1579 = vpop.f32.mrf.mxu0
        %v1580 = vadd.f32 %v1546, %v1579
        %1581 = vmatmul.bf16.gmra.mxu0 %v1059
        %v1582 = vpop.f32.mrf.mxu0
        %v1583 = vadd.f32 %v1549, %v1582
        %v1584 = vpop.f32.mrf.mxu0
        %v1585 = vadd.f32 %v1551, %v1584
        %1586 = vmatmul.bf16.gmra.mxu0 %v1061
        %v1587 = vpop.f32.mrf.mxu0
        %v1588 = vadd.f32 %v1554, %v1587
        %v1589 = vpop.f32.mrf.mxu0
        %v1590 = vadd.f32 %v1556, %v1589
        %1591 = vdwg.mxu0
        %1592 = vmatpush.bf16.msra.mxu0 %v1358
        %1593 = vmatpush.bf16.msra.mxu0 %v1354
        %1594 = vmatpush.bf16.msra.mxu0 %v1350
        %1595 = vmatpush.bf16.msra.mxu0 %v1346
        %1596 = vmatpush.bf16.msra.mxu0 %v1342
        %1597 = vmatpush.bf16.msra.mxu0 %v1338
        %1598 = vmatpush.bf16.msra.mxu0 %v1334
        %1599 = vmatpush.bf16.msra.mxu0 %v1330
        %1600 = vmatmul.bf16.gmra.mxu0 %v1052
        %v1601 = vpop.f32.mrf.mxu0
        %v1602 = vadd.f32 %v1130, %v1601
        %v1603 = vpop.f32.mrf.mxu0
        %v1604 = vadd.f32 %v1130, %v1603
        %1605 = vmatmul.bf16.gmra.mxu0 %v1054
        %v1606 = vpop.f32.mrf.mxu0
        %v1607 = vadd.f32 %v1130, %v1606
        %v1608 = vpop.f32.mrf.mxu0
        %v1609 = vadd.f32 %v1130, %v1608
        %1610 = vmatmul.bf16.gmra.mxu0 %v1056
        %v1611 = vpop.f32.mrf.mxu0
        %v1612 = vadd.f32 %v1130, %v1611
        %v1613 = vpop.f32.mrf.mxu0
        %v1614 = vadd.f32 %v1130, %v1613
        %1615 = vmatmul.bf16.gmra.mxu0 %v1058
        %v1616 = vpop.f32.mrf.mxu0
        %v1617 = vadd.f32 %v1130, %v1616
        %v1618 = vpop.f32.mrf.mxu0
        %v1619 = vadd.f32 %v1130, %v1618
        %1620 = vmatmul.bf16.gmra.mxu0 %v1060
        %v1621 = vpop.f32.mrf.mxu0
        %v1622 = vadd.f32 %v1130, %v1621
        %v1623 = vpop.f32.mrf.mxu0
        %v1624 = vadd.f32 %v1130, %v1623
        %1625 = vdwg.mxu0
        %1626 = vmatpush.bf16.msra.mxu0 %v1390
        %1627 = vmatpush.bf16.msra.mxu0 %v1386
        %1628 = vmatpush.bf16.msra.mxu0 %v1382
        %1629 = vmatpush.bf16.msra.mxu0 %v1378
        %1630 = vmatpush.bf16.msra.mxu0 %v1374
        %1631 = vmatpush.bf16.msra.mxu0 %v1370
        %1632 = vmatpush.bf16.msra.mxu0 %v1366
        %1633 = vmatpush.bf16.msra.mxu0 %v1362
        %1634 = vmatmul.bf16.gmra.mxu0 %v1053
        %v1635 = vpop.f32.mrf.mxu0
        %v1636 = vadd.f32 %v1602, %v1635
        %v1637 = vpop.f32.mrf.mxu0
        %v1638 = vadd.f32 %v1604, %v1637
        %1639 = vmatmul.bf16.gmra.mxu0 %v1055
        %v1640 = vpop.f32.mrf.mxu0
        %v1641 = vadd.f32 %v1607, %v1640
        %v1642 = vpop.f32.mrf.mxu0
        %v1643 = vadd.f32 %v1609, %v1642
        %1644 = vmatmul.bf16.gmra.mxu0 %v1057
        %v1645 = vpop.f32.mrf.mxu0
        %v1646 = vadd.f32 %v1612, %v1645
        %v1647 = vpop.f32.mrf.mxu0
        %v1648 = vadd.f32 %v1614, %v1647
        %1649 = vmatmul.bf16.gmra.mxu0 %v1059
        %v1650 = vpop.f32.mrf.mxu0
        %v1651 = vadd.f32 %v1617, %v1650
        %v1652 = vpop.f32.mrf.mxu0
        %v1653 = vadd.f32 %v1619, %v1652
        %1654 = vmatmul.bf16.gmra.mxu0 %v1061
        %v1655 = vpop.f32.mrf.mxu0
        %v1656 = vadd.f32 %v1622, %v1655
        %v1657 = vpop.f32.mrf.mxu0
        %v1658 = vadd.f32 %v1624, %v1657
        %1659 = vdwg.mxu0
        %1660 = vmatpush.bf16.msra.mxu0 %v1359
        %1661 = vmatpush.bf16.msra.mxu0 %v1355
        %1662 = vmatpush.bf16.msra.mxu0 %v1351
        %1663 = vmatpush.bf16.msra.mxu0 %v1347
        %1664 = vmatpush.bf16.msra.mxu0 %v1343
        %1665 = vmatpush.bf16.msra.mxu0 %v1339
        %1666 = vmatpush.bf16.msra.mxu0 %v1335
        %1667 = vmatpush.bf16.msra.mxu0 %v1331
        %1668 = vmatmul.bf16.gmra.mxu0 %v1052
        %v1669 = vpop.f32.mrf.mxu0
        %v1670 = vadd.f32 %v1131, %v1669
        %v1671 = vpop.f32.mrf.mxu0
        %v1672 = vadd.f32 %v1131, %v1671
        %1673 = vmatmul.bf16.gmra.mxu0 %v1054
        %v1674 = vpop.f32.mrf.mxu0
        %v1675 = vadd.f32 %v1131, %v1674
        %v1676 = vpop.f32.mrf.mxu0
        %v1677 = vadd.f32 %v1131, %v1676
        %1678 = vmatmul.bf16.gmra.mxu0 %v1056
        %v1679 = vpop.f32.mrf.mxu0
        %v1680 = vadd.f32 %v1131, %v1679
        %v1681 = vpop.f32.mrf.mxu0
        %v1682 = vadd.f32 %v1131, %v1681
        %1683 = vmatmul.bf16.gmra.mxu0 %v1058
        %v1684 = vpop.f32.mrf.mxu0
        %v1685 = vadd.f32 %v1131, %v1684
        %v1686 = vpop.f32.mrf.mxu0
        %v1687 = vadd.f32 %v1131, %v1686
        %1688 = vmatmul.bf16.gmra.mxu0 %v1060
        %v1689 = vpop.f32.mrf.mxu0
        %v1690 = vadd.f32 %v1131, %v1689
        %v1691 = vpop.f32.mrf.mxu0
        %v1692 = vadd.f32 %v1131, %v1691
        %1693 = vdwg.mxu0
        %1694 = vmatpush.bf16.msra.mxu0 %v1391
        %1695 = vmatpush.bf16.msra.mxu0 %v1387
        %1696 = vmatpush.bf16.msra.mxu0 %v1383
        %1697 = vmatpush.bf16.msra.mxu0 %v1379
        %1698 = vmatpush.bf16.msra.mxu0 %v1375
        %1699 = vmatpush.bf16.msra.mxu0 %v1371
        %1700 = vmatpush.bf16.msra.mxu0 %v1367
        %1701 = vmatpush.bf16.msra.mxu0 %v1363
        %1702 = vmatmul.bf16.gmra.mxu0 %v1053
        %v1703 = vpop.f32.mrf.mxu0
        %v1704 = vadd.f32 %v1670, %v1703
        %v1705 = vpop.f32.mrf.mxu0
        %v1706 = vadd.f32 %v1672, %v1705
        %1707 = vmatmul.bf16.gmra.mxu0 %v1055
        %v1708 = vpop.f32.mrf.mxu0
        %v1709 = vadd.f32 %v1675, %v1708
        %v1710 = vpop.f32.mrf.mxu0
        %v1711 = vadd.f32 %v1677, %v1710
        %1712 = vmatmul.bf16.gmra.mxu0 %v1057
        %v1713 = vpop.f32.mrf.mxu0
        %v1714 = vadd.f32 %v1680, %v1713
        %v1715 = vpop.f32.mrf.mxu0
        %v1716 = vadd.f32 %v1682, %v1715
        %1717 = vmatmul.bf16.gmra.mxu0 %v1059
        %v1718 = vpop.f32.mrf.mxu0
        %v1719 = vadd.f32 %v1685, %v1718
        %v1720 = vpop.f32.mrf.mxu0
        %v1721 = vadd.f32 %v1687, %v1720
        %1722 = vmatmul.bf16.gmra.mxu0 %v1061
        %v1723 = vpop.f32.mrf.mxu0
        %v1724 = vadd.f32 %v1690, %v1723
        %v1725 = vpop.f32.mrf.mxu0
        %v1726 = vadd.f32 %v1692, %v1725
        %1727 = vdwg.mxu0
        %v1728 = vadd.f32 %v310, %v1500
        %v1729 = vadd.f32 %v311, %v1568
        %v1730 = vadd.f32 %v312, %v1636
        %v1731 = vadd.f32 %v313, %v1704
        %v1732 = vadd.f32 %v314, %v1502
        %v1733 = vadd.f32 %v315, %v1570
        %v1734 = vadd.f32 %v316, %v1638
        %v1735 = vadd.f32 %v317, %v1706
        %v1736 = vadd.f32 %v318, %v1505
        %v1737 = vadd.f32 %v319, %v1573
        %v1738 = vadd.f32 %v320, %v1641
        %v1739 = vadd.f32 %v321, %v1709
        %v1740 = vadd.f32 %v322, %v1507
        %v1741 = vadd.f32 %v323, %v1575
        %v1742 = vadd.f32 %v324, %v1643
        %v1743 = vadd.f32 %v325, %v1711
        %v1744 = vadd.f32 %v326, %v1510
        %v1745 = vadd.f32 %v327, %v1578
        %v1746 = vadd.f32 %v328, %v1646
        %v1747 = vadd.f32 %v329, %v1714
        %v1748 = vadd.f32 %v330, %v1512
        %v1749 = vadd.f32 %v331, %v1580
        %v1750 = vadd.f32 %v332, %v1648
        %v1751 = vadd.f32 %v333, %v1716
        %v1752 = vadd.f32 %v334, %v1515
        %v1753 = vadd.f32 %v335, %v1583
        %v1754 = vadd.f32 %v336, %v1651
        %v1755 = vadd.f32 %v337, %v1719
        %v1756 = vadd.f32 %v338, %v1517
        %v1757 = vadd.f32 %v339, %v1585
        %v1758 = vadd.f32 %v340, %v1653
        %v1759 = vadd.f32 %v341, %v1721
        %v1760 = vadd.f32 %v342, %v1520
        %v1761 = vadd.f32 %v343, %v1588
        %v1762 = vadd.f32 %v344, %v1656
        %v1763 = vadd.f32 %v345, %v1724
        %v1764 = vadd.f32 %v346, %v1522
        %v1765 = vadd.f32 %v347, %v1590
        %v1766 = vadd.f32 %v348, %v1658
        %v1767 = vadd.f32 %v349, %v1726
        %1768 = vst [vmem:[%s307] sm:$0xff] %v1728
        %1769 = vst [vmem:[%s307 + $0x8] sm:$0xff] %v1729
        %1770 = vst [vmem:[%s307 + $0x10] sm:$0xff] %v1730
        %1771 = vst [vmem:[%s307 + $0x18] sm:$0xff] %v1731
        %1772 = vst [vmem:[%s307 + $0x20] sm:$0xff] %v1732
        %1773 = vst [vmem:[%s307 + $0x28] sm:$0xff] %v1733
        %1774 = vst [vmem:[%s307 + $0x30] sm:$0xff] %v1734
        %1775 = vst [vmem:[%s307 + $0x38] sm:$0xff] %v1735
        %1776 = vst [vmem:[%s307 + $0x40] sm:$0xff] %v1736
        %1777 = vst [vmem:[%s307 + $0x48] sm:$0xff] %v1737
        %1778 = vst [vmem:[%s307 + $0x50] sm:$0xff] %v1738
        %1779 = vst [vmem:[%s307 + $0x58] sm:$0xff] %v1739
        %1780 = vst [vmem:[%s307 + $0x60] sm:$0xff] %v1740
        %1781 = vst [vmem:[%s307 + $0x68] sm:$0xff] %v1741
        %1782 = vst [vmem:[%s307 + $0x70] sm:$0xff] %v1742
        %1783 = vst [vmem:[%s307 + $0x78] sm:$0xff] %v1743
        %1784 = vst [vmem:[%s307 + $0x80] sm:$0xff] %v1744
        %1785 = vst [vmem:[%s307 + $0x88] sm:$0xff] %v1745
        %1786 = vst [vmem:[%s307 + $0x90] sm:$0xff] %v1746
        %1787 = vst [vmem:[%s307 + $0x98] sm:$0xff] %v1747
        %1788 = vst [vmem:[%s307 + $0xa0] sm:$0xff] %v1748
        %1789 = vst [vmem:[%s307 + $0xa8] sm:$0xff] %v1749
        %1790 = vst [vmem:[%s307 + $0xb0] sm:$0xff] %v1750
        %1791 = vst [vmem:[%s307 + $0xb8] sm:$0xff] %v1751
        %1792 = vst [vmem:[%s307 + $0xc0] sm:$0xff] %v1752
        %1793 = vst [vmem:[%s307 + $0xc8] sm:$0xff] %v1753
        %1794 = vst [vmem:[%s307 + $0xd0] sm:$0xff] %v1754
        %1795 = vst [vmem:[%s307 + $0xd8] sm:$0xff] %v1755
        %1796 = vst [vmem:[%s307 + $0xe0] sm:$0xff] %v1756
        %1797 = vst [vmem:[%s307 + $0xe8] sm:$0xff] %v1757
        %1798 = vst [vmem:[%s307 + $0xf0] sm:$0xff] %v1758
        %1799 = vst [vmem:[%s307 + $0xf8] sm:$0xff] %v1759
        %1800 = vst [vmem:[%s307 + $0x100] sm:$0xff] %v1760
        %1801 = vst [vmem:[%s307 + $0x108] sm:$0xff] %v1761
        %1802 = vst [vmem:[%s307 + $0x110] sm:$0xff] %v1762
        %1803 = vst [vmem:[%s307 + $0x118] sm:$0xff] %v1763
        %1804 = vst [vmem:[%s307 + $0x120] sm:$0xff] %v1764
        %1805 = vst [vmem:[%s307 + $0x128] sm:$0xff] %v1765
        %1806 = vst [vmem:[%s307 + $0x130] sm:$0xff] %v1766
        %1807 = vst [vmem:[%s307 + $0x138] sm:$0xff] %v1767
        %s1808 = sand.u32 %s142, 1
        %s1809 = scalar_lea.sflag [#allocation4], %s1808
        %s1810 = sand.u32 %s142, 1
        %s1811 = smul.addr %s1810, 320
        %s1812 = scalar_lea.vmem [#allocation11], %s1811
        // Predicated region
        $region61: #{tpu_custom_call.1} parent=39 // pred_check
          %p1813 = pneg %p152
        $region62: #{tpu_custom_call.1} parent=39 // pred_check_branch
          %1815 = sbr.rel (%p1813) target = $region64
        $region63: #{tpu_custom_call.1} parent=39 // pred_region
          %s1816 = smul.u32 10, %s24
          %1818 = vsyncadd %s1809, 0
          %s1819 = smul.addr %s1816, 4
          %s1820 = smul.addr %s1819, 8
          %s1821 = scalar_lea.hbm %s5, %s1820
          %s1822 = sshll.u32 %s1812, 4
          %s1823 = int_to_ptr.vmem [resolvable:$true] %s1822
          %s1824 = sshll.u32 %s1821, 4
          %s1825 = int_to_ptr.hbm [resolvable:$true] %s1824
          %1830 = dma.vmem_to_hbm [thread:$0]  %s1823, 5120, %s1825, %s1809, 512, 512, 32
        $region64: #{tpu_custom_call.1} parent=39 // pred_fallthru
          _
      $region40: #{tpu_custom_call.1} parent=5 // pred_fallthru
        _
      %p1831 = scmp.le.s32.totalorder 2, %s19
      // Predicated region
      $region65: #{tpu_custom_call.1} parent=5 // pred_check
        %p1832 = pneg %p1831
      $region66: #{tpu_custom_call.1} parent=5 // pred_check_branch
        %1834 = sbr.rel (%p1832) target = $region68
      $region67: #{tpu_custom_call.1} parent=5 // pred_region
        %s1835 = ssub.s32 %s19, 2
        // Predicated region
        $region69: #{tpu_custom_call.1} parent=67 // pred_check
          %p1836 = pneg %p158
        $region70: #{tpu_custom_call.1} parent=67 // pred_check_branch
          %1838 = sbr.rel (%p1836) target = $region72
        $region71: #{tpu_custom_call.1} parent=67 // pred_region
          %s1839 = sand.u32 %s143, 1
          %s1840 = scalar_lea.sflag [#allocation4], %s1839
          %s1841 = sand.u32 %s143, 1
          %s1842 = smul.addr %s1841, 320
          %s1843 = scalar_lea.vmem [#allocation11], %s1842
          %1845 = dma.done %s1840, 5120
        $region72: #{tpu_custom_call.1} parent=67 // pred_fallthru
          _
      $region68: #{tpu_custom_call.1} parent=5 // pred_fallthru
        _
    $region6: #{tpu_custom_call.1} parent=1 // loop_footer
      %s23 = sadd.s32 1, %s19
    $region7: #{tpu_custom_call.1} parent=1 // loop_footer_branch
      %18 = sbr.rel target = $region3
    $region8: #{tpu_custom_call.1} parent=1 // loop_exit
      _
    %1846 = vsyncpa [#allocation3], 1
    %s1847 = scalar_lea.sflag [#allocation3], 1
    %1848 = vsyncpa %s1847, 1
    %1849 = vsyncpa [#allocation6], 1
    %1850 = vsyncpa [#allocation9], 1
    %1851 = vsyncpa [#allocation4], 1
    %s1852 = scalar_lea.sflag [#allocation4], 1
    %1853 = vsyncpa %s1852, 1

</llo_original>
